<compile_context>
chip_gen: v7x
topology: tpu7x:2x2x1
jax: 0.10.0
libtpu: 0.0.40
codegen_flags: <defaults>
</compile_context>

<pallas_src>
import functools

import jax
import jax.numpy as jnp
from jax.experimental import pallas as pl
from jax.experimental.pallas import tpu as pltpu


def _round_up(x, m):
    return ((x + m - 1) // m) * m


def _sage_layer_kernel(adj_ref, xk_ref, xi_ref, invdeg_ref, w_ref, b_ref,
                       out_ref, acc_ref, feat_ref):
    """One SAGEConv layer for one (row-tile i, k-tile) grid step.

    adj_ref    : [TM, TK]  bf16  count adjacency tile (rows = targets, cols = sources)
    xk_ref     : [TK, C]   bf16  neighbor features for this k slab
    xi_ref     : [TM, C]   bf16  root features for this row tile
    invdeg_ref : [TM, 1]   f32   1/deg_in (0 for isolated nodes)
    w_ref      : [2C, Co]  bf16  stacked [W_l ; W_r]
    b_ref      : [1, Co]   f32   lin_l bias
    out_ref    : [TM, Co]        layer output tile (written on last k step only)
    acc_ref    : [TM, C]   f32   scratch: running sum_j A[i,j] * x_j
    feat_ref   : [TM, 2C]  bf16  scratch: fused [agg | x] MXU operand
    """
    k = pl.program_id(1)
    c = xi_ref.shape[1]

    @pl.when(k == 0)
    def _():
        acc_ref[...] = jnp.zeros_like(acc_ref)

    # Neighbor sum for this k slab: bf16 operands, f32 accumulation on the MXU.
    acc_ref[...] += jnp.dot(adj_ref[...], xk_ref[...],
                            preferred_element_type=jnp.float32)

    @pl.when(k == pl.num_programs(1) - 1)
    def _():
        # Mean aggregation = (sum_j A[i,j] x_j) * (1/deg_i), applied post-matmul
        # so the adjacency stays an exact integer-count bf16 matrix.
        feat_ref[:, 0:c] = (acc_ref[...] * invdeg_ref[...]).astype(jnp.bfloat16)
        feat_ref[:, c:2 * c] = xi_ref[...]
        # Fused projection: [agg | x] @ [W_l ; W_r] + b_l  (one MXU pass, 2x K depth).
        h = jnp.dot(feat_ref[...], w_ref[...],
                    preferred_element_type=jnp.float32) + b_ref[...]
        # torch.nan_to_num defaults: nan -> 0, +/-inf -> finite f32 extremes.
        finfo = jnp.finfo(jnp.float32)
        h = jnp.where(jnp.isnan(h), 0.0, h)
        h = jnp.clip(h, finfo.min, finfo.max)
        h = jnp.maximum(h, 0.0)  # F.relu
        out_ref[...] = h.astype(out_ref.dtype)


def _sage_layer(adj, x_in, inv_deg, w_stack, bias, *, out_dtype, tile):
    n_pad, c_in = x_in.shape
    c_out = w_stack.shape[1]
    grid = (n_pad // tile, n_pad // tile)

    return pl.pallas_call(
        _sage_layer_kernel,
        out_shape=jax.ShapeDtypeStruct((n_pad, c_out), out_dtype),
        grid_spec=pltpu.PrefetchScalarGridSpec(
            num_scalar_prefetch=0,
            grid=grid,
            in_specs=[
                pl.BlockSpec((tile, tile), lambda i, k: (i, k)),         # adjacency tile
                pl.BlockSpec((tile, c_in), lambda i, k: (k, 0)),         # neighbor feats
                pl.BlockSpec((tile, c_in), lambda i, k: (i, 0)),         # root feats
                pl.BlockSpec((tile, 1), lambda i, k: (i, 0)),            # 1/deg rows
                pl.BlockSpec((2 * c_in, c_out), lambda i, k: (0, 0)),    # stacked W
                pl.BlockSpec((1, c_out), lambda i, k: (0, 0)),           # bias
            ],
            out_specs=pl.BlockSpec((tile, c_out), lambda i, k: (i, 0)),
            scratch_shapes=[
                pltpu.VMEM((tile, c_in), jnp.float32),       # aggregation accumulator
                pltpu.VMEM((tile, 2 * c_in), jnp.bfloat16),  # fused [agg | x] operand
            ],
        ),
        compiler_params=pltpu.CompilerParams(
            # Row axis shards across TensorCores (v7x megacore); k is the reduction.
            dimension_semantics=("parallel", "arbitrary"),
            # Above the 32 MiB default (v5e/v6e) for bigger tiles, with headroom
            # under v7x's 64 MiB physical VMEM.
            vmem_limit_bytes=48 * 1024 * 1024,
        ),
    )(adj, x_in, x_in, inv_deg, w_stack, bias)


def _pad2d(a, rows, cols):
    return jnp.pad(a, ((0, rows - a.shape[0]), (0, cols - a.shape[1])))


def edge_graph_sage_forward(x, edge_index, params, *, tile=256):
    """x: [N, Cin] f32, edge_index: [2, E] int32, params: dict (see init_params)."""
    n, cin = x.shape
    hid = params["wl1"].shape[1]
    cout = params["wl2"].shape[1]

    # ---- tile / pad sizes ---------------------------------------------------
    n8 = _round_up(n, 8)
    if n8 <= tile:
        t = n8                         # single tile: block == full array dims
    else:
        t = _round_up(tile, 128)       # multi-tile: keep blocks (8,128)-aligned
    n_pad = _round_up(n, t)
    lanes = 128
    cin_p = _round_up(cin, lanes)
    hid_p = _round_up(hid, lanes)
    cout_p = _round_up(cout, lanes)

    # ---- graph glue (plain JAX): count adjacency + 1/deg --------------------
    # TODO(synk): for large sparse graphs replace the dense N^2 adjacency with a
    # sparse gather/segment-sum kernel (PrefetchScalarGridSpec over sorted edges).
    src, tgt = edge_index[0], edge_index[1]
    adj = jnp.zeros((n_pad, n_pad), jnp.float32).at[tgt, src].add(1.0)
    deg = adj.sum(axis=1, keepdims=True)
    inv_deg = jnp.where(deg > 0.0, 1.0 / jnp.maximum(deg, 1.0), 0.0)
    adj = adj.astype(jnp.bfloat16)     # small integer counts are exact in bf16

    x_p = _pad2d(x, n_pad, cin_p).astype(jnp.bfloat16)

    # ---- stacked, zero-padded weights: [W_l ; W_r] ---------------------------
    w1 = jnp.concatenate([_pad2d(params["wl1"], cin_p, hid_p),
                          _pad2d(params["wr1"], cin_p, hid_p)],
                         axis=0).astype(jnp.bfloat16)
    b1 = _pad2d(params["bl1"].reshape(1, -1), 1, hid_p).astype(jnp.float32)
    w2 = jnp.concatenate([_pad2d(params["wl2"], hid_p, cout_p),
                          _pad2d(params["wr2"], hid_p, cout_p)],
                         axis=0).astype(jnp.bfloat16)
    b2 = _pad2d(params["bl2"].reshape(1, -1), 1, cout_p).astype(jnp.float32)

    # ---- two SAGE layers, each its own tiled/pipelined pallas_call -----------
    h1 = _sage_layer(adj, x_p, inv_deg, w1, b1, out_dtype=jnp.bfloat16, tile=t)
    h2 = _sage_layer(adj, h1, inv_deg, w2, b2, out_dtype=jnp.float32, tile=t)
    return h2[:n, :cout]


# ------------------------------ init & reference ------------------------------

def _xavier_uniform(key, shape):
    # shape = (in_features, out_features); same fan_in/fan_out as the torch
    # (out, in) weight, so the distribution matches nn.init.xavier_uniform_.
    fan_in, fan_out = shape
    bound = (6.0 / (fan_in + fan_out)) ** 0.5
    return jax.random.uniform(key, shape, jnp.float32, -bound, bound)


def init_params(key, in_channels, hidden_channels, out_channels):
    k1, k2, k3, k4 = jax.random.split(key, 4)
    return {
        # SAGEConv1: lin_l (aggregated neighbors, has bias), lin_r (root, no bias)
        "wl1": _xavier_uniform(k1, (in_channels, hidden_channels)),
        "wr1": _xavier_uniform(k2, (in_channels, hidden_channels)),
        "bl1": jnp.zeros((hidden_channels,), jnp.float32),
        # SAGEConv2
        "wl2": _xavier_uniform(k3, (hidden_channels, out_channels)),
        "wr2": _xavier_uniform(k4, (hidden_channels, out_channels)),
        "bl2": jnp.zeros((out_channels,), jnp.float32),
        # TODO(synk): edge_mlp (predict()) params are not used by forward() and are omitted.
    }


def _reference_forward(x, edge_index, params):
    """Pure-JAX f32 reference of the PyTorch forward()."""
    n = x.shape[0]
    src, tgt = edge_index[0], edge_index[1]
    adj = jnp.zeros((n, n), jnp.float32).at[tgt, src].add(1.0)
    deg = adj.sum(axis=1, keepdims=True)
    adj_mean = adj / jnp.maximum(deg, 1.0)
    finfo = jnp.finfo(jnp.float32)

    def layer(h, wl, wr, bl):
        out = adj_mean @ h @ wl + bl + h @ wr
        out = jnp.where(jnp.isnan(out), 0.0, out)
        out = jnp.clip(out, finfo.min, finfo.max)
        return jnp.maximum(out, 0.0)

    h1 = layer(x, params["wl1"], params["wr1"], params["bl1"])
    return layer(h1, params["wl2"], params["wr2"], params["bl2"])


if __name__ == "__main__":
    in_channels, hidden_channels, out_channels = 8, 32, 16
    num_nodes, num_edges = 384, 2048   # small but large enough for a 3x3 grid

    key = jax.random.PRNGKey(0)
    kx, ke, kp = jax.random.split(key, 3)

    x = jax.random.normal(kx, (num_nodes, in_channels), jnp.float32)
    edge_index = jax.random.randint(ke, (2, num_edges), 0, num_nodes, jnp.int32)
    params = init_params(kp, in_channels, hidden_channels, out_channels)

    fwd = jax.jit(functools.partial(edge_graph_sage_forward, tile=128))
    out = jax.block_until_ready(fwd(x, edge_index, params))

    assert out.shape == (num_nodes, out_channels)
    assert bool(jnp.all(jnp.isfinite(out)))
    ref = _reference_forward(x, edge_index, params)
    assert bool(jnp.allclose(out, ref, atol=1e-1, rtol=1e-1)), "mismatch vs f32 reference"
    print("KERNEL_OK")
</pallas_src>

<mosaic_0001>
module attributes {stable_mosaic.version = 11 : i64} {
  func.func private @main(%arg0: i32) attributes {dimension_semantics = [#tpu.dimension_semantics<core_parallel>], iteration_bounds = array<i64: 2>, tpu.core_type = #tpu.core_type<sc_scalar_subcore>, window_params = []} {
    return
  }
}

module attributes {stable_mosaic.version = 11 : i64} {
  func.func private @main(%arg0: i32) attributes {dimension_semantics = [#tpu.dimension_semantics<core_parallel>], iteration_bounds = array<i64: 2>, tpu.core_type = #tpu.core_type<sc_scalar_subcore>, window_params = []} {
    return
  }
}

module attributes {stable_mosaic.version = 11 : i64} {
  func.func @_sage_layer_kernel(%arg0: i32, %arg1: i32, %arg2: memref<128x128xbf16, #tpu.memory_space<vmem>>, %arg3: memref<128x128xbf16, #tpu.memory_space<vmem>>, %arg4: memref<128x128xbf16, #tpu.memory_space<vmem>>, %arg5: memref<128x1xf32, #tpu.memory_space<vmem>>, %arg6: memref<256x128xbf16, #tpu.memory_space<vmem>>, %arg7: memref<1x128xf32, #tpu.memory_space<vmem>>, %arg8: memref<128x128xf32, #tpu.memory_space<vmem>>, %arg9: memref<128x128xf32, #tpu.memory_space<vmem>>, %arg10: memref<128x256xbf16, #tpu.memory_space<vmem>>) attributes {dimension_semantics = [#tpu.dimension_semantics<parallel>, #tpu.dimension_semantics<arbitrary>], iteration_bounds = array<i64: 3, 3>, scalar_prefetch = 0 : i64, scratch_operands = 2 : i64, tpu.core_type = #tpu.core_type<tc>, window_params = [{transform_indices = @transform_0, window_bounds = array<i64: 128, 128>}, {transform_indices = @transform_1, window_bounds = array<i64: 128, 128>}, {transform_indices = @transform_2, window_bounds = array<i64: 128, 128>}, {transform_indices = @transform_3, window_bounds = array<i64: 128, 1>}, {pipeline_mode = #tpu.pipeline_mode<synchronous>, transform_indices = @transform_4, window_bounds = array<i64: 256, 128>}, {pipeline_mode = #tpu.pipeline_mode<synchronous>, transform_indices = @transform_5, window_bounds = array<i64: 1, 128>}, {transform_indices = @transform_6, window_bounds = array<i64: 128, 128>}]} {
    %c0_i32 = arith.constant 0 : i32
    %0 = arith.cmpi eq, %arg1, %c0_i32 : i32
    %1 = arith.extui %0 : i1 to i32
    %c0_i32_0 = arith.constant 0 : i32
    %2 = arith.cmpi ne, %1, %c0_i32_0 : i32
    scf.if %2 {
      %cst_9 = arith.constant 0.000000e+00 : f32
      %12 = vector.broadcast %cst_9 : f32 to vector<128x128xf32>
      %c0_10 = arith.constant 0 : index
      %c0_11 = arith.constant 0 : index
      %13 = vector.load %arg9[%c0_10, %c0_11] : memref<128x128xf32, #tpu.memory_space<vmem>>, vector<128x128xf32>
      tpu.vector_store %arg9[%c0_10, %c0_11], %12 {strides = array<i32>} : memref<128x128xf32, #tpu.memory_space<vmem>>, vector<128x128xf32>,
    } else {
    }
    %c0 = arith.constant 0 : index
    %c0_1 = arith.constant 0 : index
    %3 = vector.load %arg9[%c0, %c0_1] : memref<128x128xf32, #tpu.memory_space<vmem>>, vector<128x128xf32>
    %c0_2 = arith.constant 0 : index
    %c0_3 = arith.constant 0 : index
    %4 = vector.load %arg2[%c0_2, %c0_3] : memref<128x128xbf16, #tpu.memory_space<vmem>>, vector<128x128xbf16>
    %c0_4 = arith.constant 0 : index
    %c0_5 = arith.constant 0 : index
    %5 = vector.load %arg3[%c0_4, %c0_5] : memref<128x128xbf16, #tpu.memory_space<vmem>>, vector<128x128xbf16>
    %cst = arith.constant dense<0.000000e+00> : vector<128x128xf32>
    %6 = tpu.matmul %4, %5, %cst {dimension_numbers = #tpu.dot_dimension_numbers<[1], [0], [0], [1], [0, 0, 1, 1], [], []>} : vector<128x128xbf16>, vector<128x128xbf16>, vector<128x128xf32> -> vector<128x128xf32>
    %7 = arith.addf %3, %6 : vector<128x128xf32>
    %c0_6 = arith.constant 0 : index
    %c0_7 = arith.constant 0 : index
    %8 = vector.load %arg9[%c0_6, %c0_7] : memref<128x128xf32, #tpu.memory_space<vmem>>, vector<128x128xf32>
    tpu.vector_store %arg9[%c0_6, %c0_7], %7 {strides = array<i32>} : memref<128x128xf32, #tpu.memory_space<vmem>>, vector<128x128xf32>,
    %c2_i32 = arith.constant 2 : i32
    %9 = arith.cmpi eq, %arg1, %c2_i32 : i32
    %10 = arith.extui %9 : i1 to i32
    %c0_i32_8 = arith.constant 0 : i32
    %11 = arith.cmpi ne, %10, %c0_i32_8 : i32
    scf.if %11 {
      %c0_9 = arith.constant 0 : index
      %c0_10 = arith.constant 0 : index
      %12 = vector.load %arg9[%c0_9, %c0_10] : memref<128x128xf32, #tpu.memory_space<vmem>>, vector<128x128xf32>
      %c0_11 = arith.constant 0 : index
      %c0_12 = arith.constant 0 : index
      %13 = vector.load %arg5[%c0_11, %c0_12] : memref<128x1xf32, #tpu.memory_space<vmem>>, vector<128x1xf32>
      %14 = vector.broadcast %13 : vector<128x1xf32> to vector<128x128xf32>
      %15 = arith.mulf %12, %14 : vector<128x128xf32>
      %16 = arith.truncf %15 : vector<128x128xf32> to vector<128x128xbf16>
      %c0_13 = arith.constant 0 : index
      %c0_14 = arith.constant 0 : index
      %17 = vector.load %arg10[%c0_13, %c0_14] : memref<128x256xbf16, #tpu.memory_space<vmem>>, vector<128x128xbf16>
      tpu.vector_store %arg10[%c0_13, %c0_14], %16 {strides = array<i32>} : memref<128x256xbf16, #tpu.memory_space<vmem>>, vector<128x128xbf16>,
      %c0_15 = arith.constant 0 : index
      %c0_16 = arith.constant 0 : index
      %18 = vector.load %arg4[%c0_15, %c0_16] : memref<128x128xbf16, #tpu.memory_space<vmem>>, vector<128x128xbf16>
      %c0_17 = arith.constant 0 : index
      %c128 = arith.constant 128 : index
      %19 = vector.load %arg10[%c0_17, %c128] : memref<128x256xbf16, #tpu.memory_space<vmem>>, vector<128x128xbf16>
      tpu.vector_store %arg10[%c0_17, %c128], %18 {strides = array<i32>} : memref<128x256xbf16, #tpu.memory_space<vmem>>, vector<128x128xbf16>,
      %c0_18 = arith.constant 0 : index
      %c0_19 = arith.constant 0 : index
      %20 = vector.load %arg10[%c0_18, %c0_19] : memref<128x256xbf16, #tpu.memory_space<vmem>>, vector<128x256xbf16>
      %c0_20 = arith.constant 0 : index
      %c0_21 = arith.constant 0 : index
      %21 = vector.load %arg6[%c0_20, %c0_21] : memref<256x128xbf16, #tpu.memory_space<vmem>>, vector<256x128xbf16>
      %cst_22 = arith.constant dense<0.000000e+00> : vector<128x128xf32>
      %22 = tpu.matmul %20, %21, %cst_22 {dimension_numbers = #tpu.dot_dimension_numbers<[1], [0], [0], [1], [0, 0, 1, 1], [], []>} : vector<128x256xbf16>, vector<256x128xbf16>, vector<128x128xf32> -> vector<128x128xf32>
      %c0_23 = arith.constant 0 : index
      %c0_24 = arith.constant 0 : index
      %23 = vector.load %arg7[%c0_23, %c0_24] : memref<1x128xf32, #tpu.memory_space<vmem>>, vector<1x128xf32>
      %24 = vector.broadcast %23 : vector<1x128xf32> to vector<128x128xf32>
      %25 = arith.addf %22, %24 : vector<128x128xf32>
      %26 = arith.cmpf one, %25, %25 : vector<128x128xf32>
      %cst_25 = arith.constant 0.000000e+00 : f32
      %27 = vector.broadcast %cst_25 : f32 to vector<128x128xf32>
      %28 = arith.select %26, %27, %25 : vector<128x128xi1>, vector<128x128xf32>
      %cst_26 = arith.constant -3.40282347E+38 : f32
      %cst_27 = arith.constant 3.40282347E+38 : f32
      %29 = vector.broadcast %cst_26 : f32 to vector<128x128xf32>
      %30 = arith.maximumf %29, %28 : vector<128x128xf32>
      %31 = vector.broadcast %cst_27 : f32 to vector<128x128xf32>
      %32 = arith.minimumf %31, %30 : vector<128x128xf32>
      %cst_28 = arith.constant 0.000000e+00 : f32
      %33 = vector.broadcast %cst_28 : f32 to vector<128x128xf32>
      %34 = arith.maximumf %32, %33 : vector<128x128xf32>
      %c0_29 = arith.constant 0 : index
      %c0_30 = arith.constant 0 : index
      %35 = vector.load %arg8[%c0_29, %c0_30] : memref<128x128xf32, #tpu.memory_space<vmem>>, vector<128x128xf32>
      tpu.vector_store %arg8[%c0_29, %c0_30], %34 {strides = array<i32>} : memref<128x128xf32, #tpu.memory_space<vmem>>, vector<128x128xf32>,
    } else {
    }
    return
  }
  func.func @transform_0(%arg0: i32, %arg1: i32) -> (i32, i32) {
    %c0_i32 = arith.constant 0 : i32
    return %arg0, %arg1 : i32, i32
  }
  func.func @transform_1(%arg0: i32, %arg1: i32) -> (i32, i32) {
    %c0_i32 = arith.constant 0 : i32
    %c0_i32_0 = arith.constant 0 : i32
    return %arg1, %c0_i32 : i32, i32
  }
  func.func @transform_2(%arg0: i32, %arg1: i32) -> (i32, i32) {
    %c0_i32 = arith.constant 0 : i32
    %c0_i32_0 = arith.constant 0 : i32
    return %arg0, %c0_i32 : i32, i32
  }
  func.func @transform_3(%arg0: i32, %arg1: i32) -> (i32, i32) {
    %c0_i32 = arith.constant 0 : i32
    %c0_i32_0 = arith.constant 0 : i32
    return %arg0, %c0_i32 : i32, i32
  }
  func.func @transform_4(%arg0: i32, %arg1: i32) -> (i32, i32) {
    %c0_i32 = arith.constant 0 : i32
    %c0_i32_0 = arith.constant 0 : i32
    %c0_i32_1 = arith.constant 0 : i32
    return %c0_i32, %c0_i32_0 : i32, i32
  }
  func.func @transform_5(%arg0: i32, %arg1: i32) -> (i32, i32) {
    %c0_i32 = arith.constant 0 : i32
    %c0_i32_0 = arith.constant 0 : i32
    %c0_i32_1 = arith.constant 0 : i32
    return %c0_i32, %c0_i32_0 : i32, i32
  }
  func.func @transform_6(%arg0: i32, %arg1: i32) -> (i32, i32) {
    %c0_i32 = arith.constant 0 : i32
    %c0_i32_0 = arith.constant 0 : i32
    return %arg0, %c0_i32 : i32, i32
  }
}

module attributes {stable_mosaic.version = 11 : i64} {
  func.func @_sage_layer_kernel(%arg0: i32, %arg1: i32, %arg2: memref<128x128xbf16, #tpu.memory_space<vmem>>, %arg3: memref<128x128xbf16, #tpu.memory_space<vmem>>, %arg4: memref<128x128xbf16, #tpu.memory_space<vmem>>, %arg5: memref<128x1xf32, #tpu.memory_space<vmem>>, %arg6: memref<256x128xbf16, #tpu.memory_space<vmem>>, %arg7: memref<1x128xf32, #tpu.memory_space<vmem>>, %arg8: memref<128x128xbf16, #tpu.memory_space<vmem>>, %arg9: memref<128x128xf32, #tpu.memory_space<vmem>>, %arg10: memref<128x256xbf16, #tpu.memory_space<vmem>>) attributes {dimension_semantics = [#tpu.dimension_semantics<parallel>, #tpu.dimension_semantics<arbitrary>], iteration_bounds = array<i64: 3, 3>, scalar_prefetch = 0 : i64, scratch_operands = 2 : i64, tpu.core_type = #tpu.core_type<tc>, window_params = [{transform_indices = @transform_0, window_bounds = array<i64: 128, 128>}, {transform_indices = @transform_1, window_bounds = array<i64: 128, 128>}, {transform_indices = @transform_2, window_bounds = array<i64: 128, 128>}, {transform_indices = @transform_3, window_bounds = array<i64: 128, 1>}, {pipeline_mode = #tpu.pipeline_mode<synchronous>, transform_indices = @transform_4, window_bounds = array<i64: 256, 128>}, {pipeline_mode = #tpu.pipeline_mode<synchronous>, transform_indices = @transform_5, window_bounds = array<i64: 1, 128>}, {transform_indices = @transform_6, window_bounds = array<i64: 128, 128>}]} {
    %c0_i32 = arith.constant 0 : i32
    %0 = arith.cmpi eq, %arg1, %c0_i32 : i32
    %1 = arith.extui %0 : i1 to i32
    %c0_i32_0 = arith.constant 0 : i32
    %2 = arith.cmpi ne, %1, %c0_i32_0 : i32
    scf.if %2 {
      %cst_9 = arith.constant 0.000000e+00 : f32
      %12 = vector.broadcast %cst_9 : f32 to vector<128x128xf32>
      %c0_10 = arith.constant 0 : index
      %c0_11 = arith.constant 0 : index
      %13 = vector.load %arg9[%c0_10, %c0_11] : memref<128x128xf32, #tpu.memory_space<vmem>>, vector<128x128xf32>
      tpu.vector_store %arg9[%c0_10, %c0_11], %12 {strides = array<i32>} : memref<128x128xf32, #tpu.memory_space<vmem>>, vector<128x128xf32>,
    } else {
    }
    %c0 = arith.constant 0 : index
    %c0_1 = arith.constant 0 : index
    %3 = vector.load %arg9[%c0, %c0_1] : memref<128x128xf32, #tpu.memory_space<vmem>>, vector<128x128xf32>
    %c0_2 = arith.constant 0 : index
    %c0_3 = arith.constant 0 : index
    %4 = vector.load %arg2[%c0_2, %c0_3] : memref<128x128xbf16, #tpu.memory_space<vmem>>, vector<128x128xbf16>
    %c0_4 = arith.constant 0 : index
    %c0_5 = arith.constant 0 : index
    %5 = vector.load %arg3[%c0_4, %c0_5] : memref<128x128xbf16, #tpu.memory_space<vmem>>, vector<128x128xbf16>
    %cst = arith.constant dense<0.000000e+00> : vector<128x128xf32>
    %6 = tpu.matmul %4, %5, %cst {dimension_numbers = #tpu.dot_dimension_numbers<[1], [0], [0], [1], [0, 0, 1, 1], [], []>} : vector<128x128xbf16>, vector<128x128xbf16>, vector<128x128xf32> -> vector<128x128xf32>
    %7 = arith.addf %3, %6 : vector<128x128xf32>
    %c0_6 = arith.constant 0 : index
    %c0_7 = arith.constant 0 : index
    %8 = vector.load %arg9[%c0_6, %c0_7] : memref<128x128xf32, #tpu.memory_space<vmem>>, vector<128x128xf32>
    tpu.vector_store %arg9[%c0_6, %c0_7], %7 {strides = array<i32>} : memref<128x128xf32, #tpu.memory_space<vmem>>, vector<128x128xf32>,
    %c2_i32 = arith.constant 2 : i32
    %9 = arith.cmpi eq, %arg1, %c2_i32 : i32
    %10 = arith.extui %9 : i1 to i32
    %c0_i32_8 = arith.constant 0 : i32
    %11 = arith.cmpi ne, %10, %c0_i32_8 : i32
    scf.if %11 {
      %c0_9 = arith.constant 0 : index
      %c0_10 = arith.constant 0 : index
      %12 = vector.load %arg9[%c0_9, %c0_10] : memref<128x128xf32, #tpu.memory_space<vmem>>, vector<128x128xf32>
      %c0_11 = arith.constant 0 : index
      %c0_12 = arith.constant 0 : index
      %13 = vector.load %arg5[%c0_11, %c0_12] : memref<128x1xf32, #tpu.memory_space<vmem>>, vector<128x1xf32>
      %14 = vector.broadcast %13 : vector<128x1xf32> to vector<128x128xf32>
      %15 = arith.mulf %12, %14 : vector<128x128xf32>
      %16 = arith.truncf %15 : vector<128x128xf32> to vector<128x128xbf16>
      %c0_13 = arith.constant 0 : index
      %c0_14 = arith.constant 0 : index
      %17 = vector.load %arg10[%c0_13, %c0_14] : memref<128x256xbf16, #tpu.memory_space<vmem>>, vector<128x128xbf16>
      tpu.vector_store %arg10[%c0_13, %c0_14], %16 {strides = array<i32>} : memref<128x256xbf16, #tpu.memory_space<vmem>>, vector<128x128xbf16>,
      %c0_15 = arith.constant 0 : index
      %c0_16 = arith.constant 0 : index
      %18 = vector.load %arg4[%c0_15, %c0_16] : memref<128x128xbf16, #tpu.memory_space<vmem>>, vector<128x128xbf16>
      %c0_17 = arith.constant 0 : index
      %c128 = arith.constant 128 : index
      %19 = vector.load %arg10[%c0_17, %c128] : memref<128x256xbf16, #tpu.memory_space<vmem>>, vector<128x128xbf16>
      tpu.vector_store %arg10[%c0_17, %c128], %18 {strides = array<i32>} : memref<128x256xbf16, #tpu.memory_space<vmem>>, vector<128x128xbf16>,
      %c0_18 = arith.constant 0 : index
      %c0_19 = arith.constant 0 : index
      %20 = vector.load %arg10[%c0_18, %c0_19] : memref<128x256xbf16, #tpu.memory_space<vmem>>, vector<128x256xbf16>
      %c0_20 = arith.constant 0 : index
      %c0_21 = arith.constant 0 : index
      %21 = vector.load %arg6[%c0_20, %c0_21] : memref<256x128xbf16, #tpu.memory_space<vmem>>, vector<256x128xbf16>
      %cst_22 = arith.constant dense<0.000000e+00> : vector<128x128xf32>
      %22 = tpu.matmul %20, %21, %cst_22 {dimension_numbers = #tpu.dot_dimension_numbers<[1], [0], [0], [1], [0, 0, 1, 1], [], []>} : vector<128x256xbf16>, vector<256x128xbf16>, vector<128x128xf32> -> vector<128x128xf32>
      %c0_23 = arith.constant 0 : index
      %c0_24 = arith.constant 0 : index
      %23 = vector.load %arg7[%c0_23, %c0_24] : memref<1x128xf32, #tpu.memory_space<vmem>>, vector<1x128xf32>
      %24 = vector.broadcast %23 : vector<1x128xf32> to vector<128x128xf32>
      %25 = arith.addf %22, %24 : vector<128x128xf32>
      %26 = arith.cmpf one, %25, %25 : vector<128x128xf32>
      %cst_25 = arith.constant 0.000000e+00 : f32
      %27 = vector.broadcast %cst_25 : f32 to vector<128x128xf32>
      %28 = arith.select %26, %27, %25 : vector<128x128xi1>, vector<128x128xf32>
      %cst_26 = arith.constant -3.40282347E+38 : f32
      %cst_27 = arith.constant 3.40282347E+38 : f32
      %29 = vector.broadcast %cst_26 : f32 to vector<128x128xf32>
      %30 = arith.maximumf %29, %28 : vector<128x128xf32>
      %31 = vector.broadcast %cst_27 : f32 to vector<128x128xf32>
      %32 = arith.minimumf %31, %30 : vector<128x128xf32>
      %cst_28 = arith.constant 0.000000e+00 : f32
      %33 = vector.broadcast %cst_28 : f32 to vector<128x128xf32>
      %34 = arith.maximumf %32, %33 : vector<128x128xf32>
      %35 = arith.truncf %34 : vector<128x128xf32> to vector<128x128xbf16>
      %c0_29 = arith.constant 0 : index
      %c0_30 = arith.constant 0 : index
      %36 = vector.load %arg8[%c0_29, %c0_30] : memref<128x128xbf16, #tpu.memory_space<vmem>>, vector<128x128xbf16>
      tpu.vector_store %arg8[%c0_29, %c0_30], %35 {strides = array<i32>} : memref<128x128xbf16, #tpu.memory_space<vmem>>, vector<128x128xbf16>,
    } else {
    }
    return
  }
  func.func @transform_0(%arg0: i32, %arg1: i32) -> (i32, i32) {
    %c0_i32 = arith.constant 0 : i32
    return %arg0, %arg1 : i32, i32
  }
  func.func @transform_1(%arg0: i32, %arg1: i32) -> (i32, i32) {
    %c0_i32 = arith.constant 0 : i32
    %c0_i32_0 = arith.constant 0 : i32
    return %arg1, %c0_i32 : i32, i32
  }
  func.func @transform_2(%arg0: i32, %arg1: i32) -> (i32, i32) {
    %c0_i32 = arith.constant 0 : i32
    %c0_i32_0 = arith.constant 0 : i32
    return %arg0, %c0_i32 : i32, i32
  }
  func.func @transform_3(%arg0: i32, %arg1: i32) -> (i32, i32) {
    %c0_i32 = arith.constant 0 : i32
    %c0_i32_0 = arith.constant 0 : i32
    return %arg0, %c0_i32 : i32, i32
  }
  func.func @transform_4(%arg0: i32, %arg1: i32) -> (i32, i32) {
    %c0_i32 = arith.constant 0 : i32
    %c0_i32_0 = arith.constant 0 : i32
    %c0_i32_1 = arith.constant 0 : i32
    return %c0_i32, %c0_i32_0 : i32, i32
  }
  func.func @transform_5(%arg0: i32, %arg1: i32) -> (i32, i32) {
    %c0_i32 = arith.constant 0 : i32
    %c0_i32_0 = arith.constant 0 : i32
    %c0_i32_1 = arith.constant 0 : i32
    return %c0_i32, %c0_i32_0 : i32, i32
  }
  func.func @transform_6(%arg0: i32, %arg1: i32) -> (i32, i32) {
    %c0_i32 = arith.constant 0 : i32
    %c0_i32_0 = arith.constant 0 : i32
    return %arg0, %c0_i32 : i32, i32
  }
}

</mosaic_0001>

<llo_original>
// kernel: edge_graph_sage_forward.3
$region0: #{edge_graph_sage_forward.3}
  #allocation0 [shape = 'u32[]', space=smem, size = 0x4, offset = 0x4, fixed_abs, tag = 'smem constant byte address 0x4 - core index']
  #allocation1 [shape = 'u32[144,128]{1,0:T(1,128)}', space=vmem, size = 0x12000, scoped, tag = 'internal scratch']
  #allocation2 [shape = 'f32[128,128]{1,0:T(8,128)}', space=vmem, size = 0x10000, scoped, tag = 'scratch operand']
  #allocation3 [shape = 'bf16[128,256]{1,0:T(16,128)(2,1)}', space=vmem, size = 0x10000, scoped, tag = 'scratch operand']
  %s0 = inlined_call_operand.vmem [shape: bf16[384,384], index: 0, kind: input, shape index: {}]
  %s1 = inlined_call_operand.vmem [shape: bf16[384,128], index: 1, kind: input, shape index: {}, may-alias: {1,2}]
  %s2 = inlined_call_operand.vmem [shape: bf16[384,128], index: 2, kind: input, shape index: {}, may-alias: {1,2}]
  %s3 = inlined_call_operand.vmem [shape: f32[384,1], index: 3, kind: input, shape index: {}]
  %s4 = inlined_call_operand.vmem [shape: bf16[256,128], index: 4, kind: input, shape index: {}]
  %s5 = inlined_call_operand.vmem [shape: f32[1,128], index: 5, kind: input, shape index: {}]
  %s6 = inlined_call_operand.vmem [shape: f32[384,128], index: 6, kind: output, shape index: {}]
  %s7 = sld [smem:[#allocation0]]
  $region106: #{edge_graph_sage_forward.3} parent=0
    _
  %s9 = ssub.s32 1, %s7
  %s10 = scalar_select 0, %s9, %s7
  $region1: #{edge_graph_sage_forward.3} parent=0
    #allocation4 [shape = 'u8[65536]{0}', space=vmem, size = 0x10000, scoped, tag = 'input window, operand 0']
    loop: start=0, step=1, limit=11
    $region2: #{edge_graph_sage_forward.3} parent=1 // loop_pre_header
      _
    $region3: #{edge_graph_sage_forward.3} parent=1 // loop_header
      %s12 = sphi 0, %s16
      %p13 = scmp.ge.s32.totalorder %s12, 11
      %s19 = sphi 0, %s31
      %s20 = sphi 0, %s27
      %s21 = sphi 0, %s19
      %s22 = sphi 0, %s20
      %s23 = sphi 0, %s21
      %s24 = sphi 0, %s22
      %s36 = sphi 0, %s38
      %s39 = sphi 0, %s36
      %s40 = sphi 0, %s39
      %s56 = sphi 0, %s40
      %s62 = sphi 0, %s64
      %s65 = sphi 0, %s62
      %s66 = sphi 0, %s65
      %s82 = sphi 0, %s66
      %s88 = sphi 0, %s90
      %s91 = sphi 0, %s88
      %s92 = sphi 0, %s91
      %s108 = sphi 0, %s92
      %s114 = sphi 0, %s116
      %s117 = sphi 0, %s114
      %s118 = sphi 0, %s117
      %s134 = sphi 0, %s118
      %s138 = sphi 0, %s138
      %s140 = sphi 0, %s138
      %s141 = sphi 0, %s140
      %s155 = sphi 0, %s141
      %s159 = sphi 0, %s159
      %s161 = sphi 0, %s159
      %s162 = sphi 0, %s161
      %s176 = sphi 0, %s162
      %s182 = sphi 0, %s184
      %s185 = sphi 0, %s182
      %s186 = sphi 0, %s185
      %s202 = sphi 0, %s186
    $region4: #{edge_graph_sage_forward.3} parent=1 // loop_header_branch
      %15 = sbr.rel (%p13) target = $region8
    $region5: #{edge_graph_sage_forward.3} parent=1 // loop_body
      %s17 = ssub.s32 %s12, 1
      %s18 = ssub.s32 %s12, 2
      %s25 = sadd.s32 1, %s20
      %p26 = scmp.ge.s32.totalorder %s25, 3
      %s27 = scalar_select %p26, 0, %s25
      %s28 = sadd.s32 1, %s19
      %s29 = scalar_select %p26, %s28, %s19
      %p30 = scmp.ge.s32.totalorder %s29, 3
      %s31 = scalar_select %p30, 0, %s29
      %s32 = ssub.s32 %s19, %s31
      %s33 = ssub.s32 %s20, %s27
      %s34 = sor.u32 %s32, %s33
      %p35 = scmp.eq.s32.totalorder %s34, 0
      %s37 = sadd.s32 %s36, 1
      %s38 = scalar_select %p35, %s36, %s37
      %p41 = pneg %p35
      %p42 = scmp.eq.s32.totalorder %s12, 8
      %p43 = por %p41, %p42
      %p44 = scmp.ne.s32.totalorder %s36, %s39
      %p45 = scmp.eq.s32.totalorder %s12, 0
      %p46 = por %p44, %p45
      %p47 = scmp.ne.s32.totalorder %s36, %s39
      %p48 = scmp.eq.s32.totalorder %s17, 8
      %p49 = por %p47, %p48
      %p50 = scmp.ne.s32.totalorder %s39, %s40
      %p51 = scmp.eq.s32.totalorder %s17, 0
      %p52 = por %p50, %p51
      %p53 = scmp.ne.s32.totalorder %s39, %s40
      %p54 = scmp.eq.s32.totalorder %s18, 8
      %p55 = por %p53, %p54
      %p57 = scmp.ne.s32.totalorder %s40, %s56
      %p58 = scmp.eq.s32.totalorder %s18, 0
      %p59 = por %p57, %p58
      %s60 = ssub.s32 %s20, %s27
      %p61 = scmp.eq.s32.totalorder %s60, 0
      %s63 = sadd.s32 %s62, 1
      %s64 = scalar_select %p61, %s62, %s63
      %p67 = pneg %p61
      %p68 = scmp.eq.s32.totalorder %s12, 8
      %p69 = por %p67, %p68
      %p70 = scmp.ne.s32.totalorder %s62, %s65
      %p71 = scmp.eq.s32.totalorder %s12, 0
      %p72 = por %p70, %p71
      %p73 = scmp.ne.s32.totalorder %s62, %s65
      %p74 = scmp.eq.s32.totalorder %s17, 8
      %p75 = por %p73, %p74
      %p76 = scmp.ne.s32.totalorder %s65, %s66
      %p77 = scmp.eq.s32.totalorder %s17, 0
      %p78 = por %p76, %p77
      %p79 = scmp.ne.s32.totalorder %s65, %s66
      %p80 = scmp.eq.s32.totalorder %s18, 8
      %p81 = por %p79, %p80
      %p83 = scmp.ne.s32.totalorder %s66, %s82
      %p84 = scmp.eq.s32.totalorder %s18, 0
      %p85 = por %p83, %p84
      %s86 = ssub.s32 %s19, %s31
      %p87 = scmp.eq.s32.totalorder %s86, 0
      %s89 = sadd.s32 %s88, 1
      %s90 = scalar_select %p87, %s88, %s89
      %p93 = pneg %p87
      %p94 = scmp.eq.s32.totalorder %s12, 8
      %p95 = por %p93, %p94
      %p96 = scmp.ne.s32.totalorder %s88, %s91
      %p97 = scmp.eq.s32.totalorder %s12, 0
      %p98 = por %p96, %p97
      %p99 = scmp.ne.s32.totalorder %s88, %s91
      %p100 = scmp.eq.s32.totalorder %s17, 8
      %p101 = por %p99, %p100
      %p102 = scmp.ne.s32.totalorder %s91, %s92
      %p103 = scmp.eq.s32.totalorder %s17, 0
      %p104 = por %p102, %p103
      %p105 = scmp.ne.s32.totalorder %s91, %s92
      %p106 = scmp.eq.s32.totalorder %s18, 8
      %p107 = por %p105, %p106
      %p109 = scmp.ne.s32.totalorder %s92, %s108
      %p110 = scmp.eq.s32.totalorder %s18, 0
      %p111 = por %p109, %p110
      %s112 = ssub.s32 %s19, %s31
      %p113 = scmp.eq.s32.totalorder %s112, 0
      %s115 = sadd.s32 %s114, 1
      %s116 = scalar_select %p113, %s114, %s115
      %p119 = pneg %p113
      %p120 = scmp.eq.s32.totalorder %s12, 8
      %p121 = por %p119, %p120
      %p122 = scmp.ne.s32.totalorder %s114, %s117
      %p123 = scmp.eq.s32.totalorder %s12, 0
      %p124 = por %p122, %p123
      %p125 = scmp.ne.s32.totalorder %s114, %s117
      %p126 = scmp.eq.s32.totalorder %s17, 8
      %p127 = por %p125, %p126
      %p128 = scmp.ne.s32.totalorder %s117, %s118
      %p129 = scmp.eq.s32.totalorder %s17, 0
      %p130 = por %p128, %p129
      %p131 = scmp.ne.s32.totalorder %s117, %s118
      %p132 = scmp.eq.s32.totalorder %s18, 8
      %p133 = por %p131, %p132
      %p135 = scmp.ne.s32.totalorder %s118, %s134
      %p136 = scmp.eq.s32.totalorder %s18, 0
      %p137 = por %p135, %p136
      %s139 = sadd.s32 %s138, 1
      %p142 = scmp.eq.s32.totalorder %s12, 8
      %p143 = scmp.ne.s32.totalorder %s138, %s140
      %p144 = scmp.eq.s32.totalorder %s12, 0
      %p145 = por %p143, %p144
      %p146 = scmp.ne.s32.totalorder %s138, %s140
      %p147 = scmp.eq.s32.totalorder %s17, 8
      %p148 = por %p146, %p147
      %p149 = scmp.ne.s32.totalorder %s140, %s141
      %p150 = scmp.eq.s32.totalorder %s17, 0
      %p151 = por %p149, %p150
      %p152 = scmp.ne.s32.totalorder %s140, %s141
      %p153 = scmp.eq.s32.totalorder %s18, 8
      %p154 = por %p152, %p153
      %p156 = scmp.ne.s32.totalorder %s141, %s155
      %p157 = scmp.eq.s32.totalorder %s18, 0
      %p158 = por %p156, %p157
      %s160 = sadd.s32 %s159, 1
      %p163 = scmp.eq.s32.totalorder %s12, 8
      %p164 = scmp.ne.s32.totalorder %s159, %s161
      %p165 = scmp.eq.s32.totalorder %s12, 0
      %p166 = por %p164, %p165
      %p167 = scmp.ne.s32.totalorder %s159, %s161
      %p168 = scmp.eq.s32.totalorder %s17, 8
      %p169 = por %p167, %p168
      %p170 = scmp.ne.s32.totalorder %s161, %s162
      %p171 = scmp.eq.s32.totalorder %s17, 0
      %p172 = por %p170, %p171
      %p173 = scmp.ne.s32.totalorder %s161, %s162
      %p174 = scmp.eq.s32.totalorder %s18, 8
      %p175 = por %p173, %p174
      %p177 = scmp.ne.s32.totalorder %s162, %s176
      %p178 = scmp.eq.s32.totalorder %s18, 0
      %p179 = por %p177, %p178
      %s180 = ssub.s32 %s19, %s31
      %p181 = scmp.eq.s32.totalorder %s180, 0
      %s183 = sadd.s32 %s182, 1
      %s184 = scalar_select %p181, %s182, %s183
      %p187 = pneg %p181
      %p188 = scmp.eq.s32.totalorder %s12, 8
      %p189 = por %p187, %p188
      %p190 = scmp.ne.s32.totalorder %s182, %s185
      %p191 = scmp.eq.s32.totalorder %s12, 0
      %p192 = por %p190, %p191
      %p193 = scmp.ne.s32.totalorder %s182, %s185
      %p194 = scmp.eq.s32.totalorder %s17, 8
      %p195 = por %p193, %p194
      %p196 = scmp.ne.s32.totalorder %s185, %s186
      %p197 = scmp.eq.s32.totalorder %s17, 0
      %p198 = por %p196, %p197
      %p199 = scmp.ne.s32.totalorder %s185, %s186
      %p200 = scmp.eq.s32.totalorder %s18, 8
      %p201 = por %p199, %p200
      %p203 = scmp.ne.s32.totalorder %s186, %s202
      %p204 = scmp.eq.s32.totalorder %s18, 0
      %p205 = por %p203, %p204
      %p206 = scmp.le.s32.totalorder 1, %s12
      %p207 = scmp.lt.s32.totalorder %s12, 10
      %p208 = pnand %p206, %p207
      %p209 = pneg %p208
      // Predicated region
      $region9: #{edge_graph_sage_forward.3} parent=5 // pred_check
        _
      $region10: #{edge_graph_sage_forward.3} parent=5 // pred_check_branch
        %211 = sbr.rel (%p208) target = $region12
      $region11: #{edge_graph_sage_forward.3} parent=5 // pred_region
        %s212 = ssub.s32 %s12, 1
        // Predicated region
        $region13: #{edge_graph_sage_forward.3} parent=11 // pred_check
          %p213 = pneg %p151
        $region14: #{edge_graph_sage_forward.3} parent=11 // pred_check_branch
          %215 = sbr.rel (%p213) target = $region16
        $region15: #{edge_graph_sage_forward.3} parent=11 // pred_region
          _
        $region16: #{edge_graph_sage_forward.3} parent=11 // pred_fallthru
          _
        // Predicated region
        $region17: #{edge_graph_sage_forward.3} parent=11 // pred_check
          %p216 = pneg %p172
        $region18: #{edge_graph_sage_forward.3} parent=11 // pred_check_branch
          %218 = sbr.rel (%p216) target = $region20
        $region19: #{edge_graph_sage_forward.3} parent=11 // pred_region
          _
        $region20: #{edge_graph_sage_forward.3} parent=11 // pred_fallthru
          _
      $region12: #{edge_graph_sage_forward.3} parent=5 // pred_fallthru
        _
      %p219 = scmp.lt.s32.totalorder %s12, 9
      // Predicated region
      $region21: #{edge_graph_sage_forward.3} parent=5 // pred_check
        %p220 = pneg %p219
      $region22: #{edge_graph_sage_forward.3} parent=5 // pred_check_branch
        %222 = sbr.rel (%p220) target = $region24
      $region23: #{edge_graph_sage_forward.3} parent=5 // pred_region
        // Predicated region
        $region25: #{edge_graph_sage_forward.3} parent=23 // pred_check
          %p223 = pneg %p46
        $region26: #{edge_graph_sage_forward.3} parent=23 // pred_check_branch
          %225 = sbr.rel (%p223) target = $region28
        $region27: #{edge_graph_sage_forward.3} parent=23 // pred_region
          %s226 = sand.u32 %s36, 1
          %s227 = sand.u32 %s36, 1
          %s228 = smul.addr %s227, 64
          %s229 = scalar_lea.vmem [#allocation4], %s228
          %s230 = smul.u32 16, %s19
          %s231 = smul.addr %s230, 3
          %s232 = sadd.s32 %s20, %s231
          %s233 = smul.addr %s232, 4
          %s234 = scalar_lea.vmem %s0, %s233
          // Predicated region
          $region29: #{edge_graph_sage_forward.3} parent=27 // pred_check
            _
          $region30: #{edge_graph_sage_forward.3} parent=27 // pred_check_branch
            %236 = sbr.rel (0) target = $region32
          $region31: #{edge_graph_sage_forward.3} parent=27 // pred_region
            // Predicated region
            $region33: #{edge_graph_sage_forward.3} parent=31 // pred_check
              _
            $region34: #{edge_graph_sage_forward.3} parent=31 // pred_check_branch
              %238 = sbr.rel target = $region36
            $region35: #{edge_graph_sage_forward.3} parent=31 // pred_region
              // Predicated region
              $region48: #{edge_graph_sage_forward.3} parent=35 // pred_check
                _
              $region49: #{edge_graph_sage_forward.3} parent=35 // pred_check_branch
                %283 = sbr.rel (0) target = $region51
              $region50: #{edge_graph_sage_forward.3} parent=35 // pred_region
                loop: start=0, step=1, limit=1
                $region52: #{edge_graph_sage_forward.3} parent=50 // loop_pre_header
                  _
                $region53: #{edge_graph_sage_forward.3} parent=50 // loop_header
                  %s285 = sphi 0, %s289
                  %p286 = scmp.ge.s32.totalorder %s285, 1
                  %s290 = sphi %s234, %s234
                  %s291 = sphi %s229, %s229
                $region54: #{edge_graph_sage_forward.3} parent=50 // loop_header_branch
                  %288 = sbr.rel (%p286) target = $region58
                $region55: #{edge_graph_sage_forward.3} parent=50 // loop_body
                  _
                $region56: #{edge_graph_sage_forward.3} parent=50 // loop_footer
                  %s289 = sadd.s32 1, %s285
                $region57: #{edge_graph_sage_forward.3} parent=50 // loop_footer_branch
                  %284 = sbr.rel target = $region53
                $region58: #{edge_graph_sage_forward.3} parent=50 // loop_exit
                  _
                loop: start=0, step=1, limit=1
                $region59: #{edge_graph_sage_forward.3} parent=50 // loop_pre_header
                  _
                $region60: #{edge_graph_sage_forward.3} parent=50 // loop_header
                  %s294 = sphi 0, %s298
                  %p295 = scmp.ge.s32.totalorder %s294, 1
                  %s299 = sphi %s234, %s234
                  %s300 = sphi %s229, %s229
                $region61: #{edge_graph_sage_forward.3} parent=50 // loop_header_branch
                  %297 = sbr.rel (%p295) target = $region65
                $region62: #{edge_graph_sage_forward.3} parent=50 // loop_body
                  %v301 = vld [vmem:[%s299] sm:$0xf]
                  %302 = vst [vmem:[%s300] sm:$0xf] %v301
                  %v303 = vld [vmem:[%s299 + $0xc] sm:$0xf]
                  %304 = vst [vmem:[%s300 + $0x4] sm:$0xf] %v303
                  %v305 = vld [vmem:[%s299 + $0x18] sm:$0xf]
                  %306 = vst [vmem:[%s300 + $0x8] sm:$0xf] %v305
                  %v307 = vld [vmem:[%s299 + $0x24] sm:$0xf]
                  %308 = vst [vmem:[%s300 + $0xc] sm:$0xf] %v307
                  %v309 = vld [vmem:[%s299 + $0x30] sm:$0xf]
                  %310 = vst [vmem:[%s300 + $0x10] sm:$0xf] %v309
                  %v311 = vld [vmem:[%s299 + $0x3c] sm:$0xf]
                  %312 = vst [vmem:[%s300 + $0x14] sm:$0xf] %v311
                  %v313 = vld [vmem:[%s299 + $0x48] sm:$0xf]
                  %314 = vst [vmem:[%s300 + $0x18] sm:$0xf] %v313
                  %v315 = vld [vmem:[%s299 + $0x54] sm:$0xf]
                  %316 = vst [vmem:[%s300 + $0x1c] sm:$0xf] %v315
                  %v317 = vld [vmem:[%s299 + $0x60] sm:$0xf]
                  %318 = vst [vmem:[%s300 + $0x20] sm:$0xf] %v317
                  %v319 = vld [vmem:[%s299 + $0x6c] sm:$0xf]
                  %320 = vst [vmem:[%s300 + $0x24] sm:$0xf] %v319
                  %v321 = vld [vmem:[%s299 + $0x78] sm:$0xf]
                  %322 = vst [vmem:[%s300 + $0x28] sm:$0xf] %v321
                  %v323 = vld [vmem:[%s299 + $0x84] sm:$0xf]
                  %324 = vst [vmem:[%s300 + $0x2c] sm:$0xf] %v323
                  %v325 = vld [vmem:[%s299 + $0x90] sm:$0xf]
                  %326 = vst [vmem:[%s300 + $0x30] sm:$0xf] %v325
                  %v327 = vld [vmem:[%s299 + $0x9c] sm:$0xf]
                  %328 = vst [vmem:[%s300 + $0x34] sm:$0xf] %v327
                  %v329 = vld [vmem:[%s299 + $0xa8] sm:$0xf]
                  %330 = vst [vmem:[%s300 + $0x38] sm:$0xf] %v329
                  %v331 = vld [vmem:[%s299 + $0xb4] sm:$0xf]
                  %332 = vst [vmem:[%s300 + $0x3c] sm:$0xf] %v331
                $region63: #{edge_graph_sage_forward.3} parent=50 // loop_footer
                  %s298 = sadd.s32 1, %s294
                $region64: #{edge_graph_sage_forward.3} parent=50 // loop_footer_branch
                  %293 = sbr.rel target = $region60
                $region65: #{edge_graph_sage_forward.3} parent=50 // loop_exit
                  _
              $region51: #{edge_graph_sage_forward.3} parent=35 // pred_fallthru
                _
            $region36: #{edge_graph_sage_forward.3} parent=31 // pred_fallthru
              _
            // Predicated region
            $region37: #{edge_graph_sage_forward.3} parent=31 // pred_check
              _
            $region38: #{edge_graph_sage_forward.3} parent=31 // pred_check_branch
              %240 = sbr.rel (0) target = $region40
            $region39: #{edge_graph_sage_forward.3} parent=31 // pred_region
              loop: start=0, step=1, limit=1
              $region41: #{edge_graph_sage_forward.3} parent=39 // loop_pre_header
                _
              $region42: #{edge_graph_sage_forward.3} parent=39 // loop_header
                %s243 = sphi 0, %s247
                %p244 = scmp.ge.s32.totalorder %s243, 1
                %s248 = sphi %s234, %s234
                %s249 = sphi %s229, %s229
              $region43: #{edge_graph_sage_forward.3} parent=39 // loop_header_branch
                %246 = sbr.rel (%p244) target = $region47
              $region44: #{edge_graph_sage_forward.3} parent=39 // loop_body
                %v250 = vld [vmem:[%s248] sm:$0xf]
                %251 = vst [vmem:[%s249] sm:$0xf] %v250
                %v252 = vld [vmem:[%s248 + $0xc] sm:$0xf]
                %253 = vst [vmem:[%s249 + $0x4] sm:$0xf] %v252
                %v254 = vld [vmem:[%s248 + $0x18] sm:$0xf]
                %255 = vst [vmem:[%s249 + $0x8] sm:$0xf] %v254
                %v256 = vld [vmem:[%s248 + $0x24] sm:$0xf]
                %257 = vst [vmem:[%s249 + $0xc] sm:$0xf] %v256
                %v258 = vld [vmem:[%s248 + $0x30] sm:$0xf]
                %259 = vst [vmem:[%s249 + $0x10] sm:$0xf] %v258
                %v260 = vld [vmem:[%s248 + $0x3c] sm:$0xf]
                %261 = vst [vmem:[%s249 + $0x14] sm:$0xf] %v260
                %v262 = vld [vmem:[%s248 + $0x48] sm:$0xf]
                %263 = vst [vmem:[%s249 + $0x18] sm:$0xf] %v262
                %v264 = vld [vmem:[%s248 + $0x54] sm:$0xf]
                %265 = vst [vmem:[%s249 + $0x1c] sm:$0xf] %v264
                %v266 = vld [vmem:[%s248 + $0x60] sm:$0xf]
                %267 = vst [vmem:[%s249 + $0x20] sm:$0xf] %v266
                %v268 = vld [vmem:[%s248 + $0x6c] sm:$0xf]
                %269 = vst [vmem:[%s249 + $0x24] sm:$0xf] %v268
                %v270 = vld [vmem:[%s248 + $0x78] sm:$0xf]
                %271 = vst [vmem:[%s249 + $0x28] sm:$0xf] %v270
                %v272 = vld [vmem:[%s248 + $0x84] sm:$0xf]
                %273 = vst [vmem:[%s249 + $0x2c] sm:$0xf] %v272
                %v274 = vld [vmem:[%s248 + $0x90] sm:$0xf]
                %275 = vst [vmem:[%s249 + $0x30] sm:$0xf] %v274
                %v276 = vld [vmem:[%s248 + $0x9c] sm:$0xf]
                %277 = vst [vmem:[%s249 + $0x34] sm:$0xf] %v276
                %v278 = vld [vmem:[%s248 + $0xa8] sm:$0xf]
                %279 = vst [vmem:[%s249 + $0x38] sm:$0xf] %v278
                %v280 = vld [vmem:[%s248 + $0xb4] sm:$0xf]
                %281 = vst [vmem:[%s249 + $0x3c] sm:$0xf] %v280
              $region45: #{edge_graph_sage_forward.3} parent=39 // loop_footer
                %s247 = sadd.s32 1, %s243
              $region46: #{edge_graph_sage_forward.3} parent=39 // loop_footer_branch
                %242 = sbr.rel target = $region42
              $region47: #{edge_graph_sage_forward.3} parent=39 // loop_exit
                _
            $region40: #{edge_graph_sage_forward.3} parent=31 // pred_fallthru
              _
          $region32: #{edge_graph_sage_forward.3} parent=27 // pred_fallthru
            _
          %333 = vnop
        $region28: #{edge_graph_sage_forward.3} parent=23 // pred_fallthru
          _
        // Predicated region
        $region66: #{edge_graph_sage_forward.3} parent=23 // pred_check
          %p334 = pneg %p72
        $region67: #{edge_graph_sage_forward.3} parent=23 // pred_check_branch
          %336 = sbr.rel (%p334) target = $region69
        $region68: #{edge_graph_sage_forward.3} parent=23 // pred_region
          %s337 = smul.u32 16, %s20
          %p338 = scmp.lt.s32.totalorder %s337, 47
          %s339 = scalar_select %p338, %s337, 47
          %s340 = smul.addr %s339, 4
          %s341 = scalar_lea.vmem %s1, %s340
          %s342 = smul.u32 16, %s20
        $region69: #{edge_graph_sage_forward.3} parent=23 // pred_fallthru
          _
        // Predicated region
        $region70: #{edge_graph_sage_forward.3} parent=23 // pred_check
          %p343 = pneg %p98
        $region71: #{edge_graph_sage_forward.3} parent=23 // pred_check_branch
          %345 = sbr.rel (%p343) target = $region73
        $region72: #{edge_graph_sage_forward.3} parent=23 // pred_region
          %s346 = smul.u32 16, %s19
          %p347 = scmp.lt.s32.totalorder %s346, 47
          %s348 = scalar_select %p347, %s346, 47
          %s349 = smul.addr %s348, 4
          %s350 = scalar_lea.vmem %s2, %s349
          %s351 = smul.u32 16, %s19
        $region73: #{edge_graph_sage_forward.3} parent=23 // pred_fallthru
          _
        // Predicated region
        $region74: #{edge_graph_sage_forward.3} parent=23 // pred_check
          %p352 = pneg %p124
        $region75: #{edge_graph_sage_forward.3} parent=23 // pred_check_branch
          %354 = sbr.rel (%p352) target = $region77
        $region76: #{edge_graph_sage_forward.3} parent=23 // pred_region
          %s355 = smul.u32 16, %s19
          %p356 = scmp.lt.s32.totalorder %s355, 47
          %s357 = scalar_select %p356, %s355, 47
          %s358 = smul.addr %s357, 8
          %s359 = scalar_lea.vmem %s3, %s358
          %s360 = smul.u32 16, %s19
        $region77: #{edge_graph_sage_forward.3} parent=23 // pred_fallthru
          _
      $region24: #{edge_graph_sage_forward.3} parent=5 // pred_fallthru
        _
      %p361 = scmp.le.s32.totalorder 1, %s12
      %p362 = scmp.lt.s32.totalorder %s12, 10
      %p363 = pnand %p361, %p362
      %p364 = pneg %p363
      // Predicated region
      $region78: #{edge_graph_sage_forward.3} parent=5 // pred_check
        _
      $region79: #{edge_graph_sage_forward.3} parent=5 // pred_check_branch
        %366 = sbr.rel (%p363) target = $region81
      $region80: #{edge_graph_sage_forward.3} parent=5 // pred_region
        %s367 = ssub.s32 %s12, 1
        %s368 = sand.u32 %s39, 1
        %s369 = sand.u32 %s39, 1
        %s370 = smul.addr %s369, 64
        %s371 = scalar_lea.vmem [#allocation4], %s370
        // Predicated region
        $region82: #{edge_graph_sage_forward.3} parent=80 // pred_check
          %p372 = pneg %p52
        $region83: #{edge_graph_sage_forward.3} parent=80 // pred_check_branch
          %374 = sbr.rel (%p372) target = $region85
        $region84: #{edge_graph_sage_forward.3} parent=80 // pred_region
          _
        $region85: #{edge_graph_sage_forward.3} parent=80 // pred_fallthru
          _
        %s375 = sand.u32 %s39, 1
        %s376 = sand.u32 %s39, 1
        %s377 = smul.addr %s376, 64
        %s378 = scalar_lea.vmem [#allocation4], %s377
        %p379 = pneg %p52
        %p380 = pneg %p49
        %s381 = smul.u32 16, %s22
        %p382 = scmp.lt.s32.totalorder %s381, 47
        %s383 = scalar_select %p382, %s381, 47
        %s384 = smul.addr %s383, 4
        %s385 = scalar_lea.vmem %s1, %s384
        %p386 = pneg %p78
        %p387 = pneg %p75
        %s388 = smul.u32 16, %s21
        %p389 = scmp.lt.s32.totalorder %s388, 47
        %s390 = scalar_select %p389, %s388, 47
        %s391 = smul.addr %s390, 4
        %s392 = scalar_lea.vmem %s2, %s391
        %p393 = pneg %p104
        %p394 = pneg %p101
        %s395 = smul.u32 16, %s21
        %p396 = scmp.lt.s32.totalorder %s395, 47
        %s397 = scalar_select %p396, %s395, 47
        %s398 = smul.addr %s397, 8
        %s399 = scalar_lea.vmem %s3, %s398
        %p400 = pneg %p130
        %p401 = pneg %p127
        %p402 = pneg %p151
        %p403 = pneg %p148
        %p404 = pneg %p172
        %p405 = pneg %p169
        %p406 = pneg %p198
        %p407 = pneg %p195
        %s408 = smul.u32 16, %s21
        %p409 = scmp.lt.s32.totalorder %s408, 47
        %s410 = scalar_select %p409, %s408, 47
        %s411 = smul.addr %s410, 8
        %s412 = scalar_lea.vmem %s6, %s411
        %s413 = smul.u32 16, %s21
        %s414 = smul.u32 16, %s22
        %p415 = scmp.lt.s32.totalorder %s414, 47
        %s416 = scalar_select %p415, %s414, 47
        %s417 = smul.addr %s416, 4
        %s418 = scalar_lea.vmem %s1, %s417
        %s419 = smul.u32 16, %s22
        %s420 = smul.u32 16, %s21
        %p421 = scmp.lt.s32.totalorder %s420, 47
        %s422 = scalar_select %p421, %s420, 47
        %s423 = smul.addr %s422, 4
        %s424 = scalar_lea.vmem %s2, %s423
        %s425 = smul.u32 16, %s21
        %s426 = smul.u32 16, %s21
        %p427 = scmp.lt.s32.totalorder %s426, 47
        %s428 = scalar_select %p427, %s426, 47
        %s429 = smul.addr %s428, 8
        %s430 = scalar_lea.vmem %s3, %s429
        %s431 = smul.u32 16, %s21
        %s432 = smul.u32 16, %s21
        %p433 = scmp.lt.s32.totalorder %s432, 47
        %s434 = scalar_select %p433, %s432, 47
        %s435 = smul.addr %s434, 8
        %s436 = scalar_lea.vmem %s6, %s435
        %s437 = smul.u32 16, %s21
        %p439 = scmp.eq.s32.totalorder %s22, 0
        // Predicated region
        $region86: #{edge_graph_sage_forward.3} parent=80 // pred_check
          %p440 = pneg %p439
        $region87: #{edge_graph_sage_forward.3} parent=80 // pred_check_branch
          %442 = sbr.rel (%p440) target = $region89
        $region88: #{edge_graph_sage_forward.3} parent=80 // pred_region
          %443 = vst [vmem:[#allocation2] sm:$0xff] 0.0
          %444 = vst [vmem:[#allocation2 + $0x8] sm:$0xff] 0.0
          %445 = vst [vmem:[#allocation2 + $0x10] sm:$0xff] 0.0
          %446 = vst [vmem:[#allocation2 + $0x18] sm:$0xff] 0.0
          %447 = vst [vmem:[#allocation2 + $0x20] sm:$0xff] 0.0
          %448 = vst [vmem:[#allocation2 + $0x28] sm:$0xff] 0.0
          %449 = vst [vmem:[#allocation2 + $0x30] sm:$0xff] 0.0
          %450 = vst [vmem:[#allocation2 + $0x38] sm:$0xff] 0.0
          %451 = vst [vmem:[#allocation2 + $0x40] sm:$0xff] 0.0
          %452 = vst [vmem:[#allocation2 + $0x48] sm:$0xff] 0.0
          %453 = vst [vmem:[#allocation2 + $0x50] sm:$0xff] 0.0
          %454 = vst [vmem:[#allocation2 + $0x58] sm:$0xff] 0.0
          %455 = vst [vmem:[#allocation2 + $0x60] sm:$0xff] 0.0
          %456 = vst [vmem:[#allocation2 + $0x68] sm:$0xff] 0.0
          %457 = vst [vmem:[#allocation2 + $0x70] sm:$0xff] 0.0
          %458 = vst [vmem:[#allocation2 + $0x78] sm:$0xff] 0.0
        $region89: #{edge_graph_sage_forward.3} parent=80 // pred_fallthru
          _
        %v459 = vld [vmem:[#allocation2] sm:$0xff]
        %v460 = vld [vmem:[#allocation2 + $0x8] sm:$0xff]
        %v461 = vld [vmem:[#allocation2 + $0x10] sm:$0xff]
        %v462 = vld [vmem:[#allocation2 + $0x18] sm:$0xff]
        %v463 = vld [vmem:[#allocation2 + $0x20] sm:$0xff]
        %v464 = vld [vmem:[#allocation2 + $0x28] sm:$0xff]
        %v465 = vld [vmem:[#allocation2 + $0x30] sm:$0xff]
        %v466 = vld [vmem:[#allocation2 + $0x38] sm:$0xff]
        %v467 = vld [vmem:[#allocation2 + $0x40] sm:$0xff]
        %v468 = vld [vmem:[#allocation2 + $0x48] sm:$0xff]
        %v469 = vld [vmem:[#allocation2 + $0x50] sm:$0xff]
        %v470 = vld [vmem:[#allocation2 + $0x58] sm:$0xff]
        %v471 = vld [vmem:[#allocation2 + $0x60] sm:$0xff]
        %v472 = vld [vmem:[#allocation2 + $0x68] sm:$0xff]
        %v473 = vld [vmem:[#allocation2 + $0x70] sm:$0xff]
        %v474 = vld [vmem:[#allocation2 + $0x78] sm:$0xff]
        %v475 = vld [vmem:[%s371] sm:$0xf]
        %v476 = vld [vmem:[%s371 + $0x4] sm:$0xf]
        %v477 = vld [vmem:[%s371 + $0x8] sm:$0xf]
        %v478 = vld [vmem:[%s371 + $0xc] sm:$0xf]
        %v479 = vld [vmem:[%s371 + $0x10] sm:$0xf]
        %v480 = vld [vmem:[%s371 + $0x14] sm:$0xf]
        %v481 = vld [vmem:[%s371 + $0x18] sm:$0xf]
        %v482 = vld [vmem:[%s371 + $0x1c] sm:$0xf]
        %v483 = vld [vmem:[%s371 + $0x20] sm:$0xf]
        %v484 = vld [vmem:[%s371 + $0x24] sm:$0xf]
        %v485 = vld [vmem:[%s371 + $0x28] sm:$0xf]
        %v486 = vld [vmem:[%s371 + $0x2c] sm:$0xf]
        %v487 = vld [vmem:[%s371 + $0x30] sm:$0xf]
        %v488 = vld [vmem:[%s371 + $0x34] sm:$0xf]
        %v489 = vld [vmem:[%s371 + $0x38] sm:$0xf]
        %v490 = vld [vmem:[%s371 + $0x3c] sm:$0xf]
        %v491 = vld [vmem:[%s418] sm:$0xf]
        %v492 = vld [vmem:[%s418 + $0x4] sm:$0xf]
        %v493 = vld [vmem:[%s418 + $0x8] sm:$0xf]
        %v494 = vld [vmem:[%s418 + $0xc] sm:$0xf]
        %v495 = vld [vmem:[%s418 + $0x10] sm:$0xf]
        %v496 = vld [vmem:[%s418 + $0x14] sm:$0xf]
        %v497 = vld [vmem:[%s418 + $0x18] sm:$0xf]
        %v498 = vld [vmem:[%s418 + $0x1c] sm:$0xf]
        %v499 = vld [vmem:[%s418 + $0x20] sm:$0xf]
        %v500 = vld [vmem:[%s418 + $0x24] sm:$0xf]
        %v501 = vld [vmem:[%s418 + $0x28] sm:$0xf]
        %v502 = vld [vmem:[%s418 + $0x2c] sm:$0xf]
        %v503 = vld [vmem:[%s418 + $0x30] sm:$0xf]
        %v504 = vld [vmem:[%s418 + $0x34] sm:$0xf]
        %v505 = vld [vmem:[%s418 + $0x38] sm:$0xf]
        %v506 = vld [vmem:[%s418 + $0x3c] sm:$0xf]
        %v523 = vunpack.c.l.b16 %v475
        %v524 = vunpack.c.l.b16 %v476
        %v525 = vunpack.c.l.b16 %v477
        %v526 = vunpack.c.l.b16 %v478
        %v527 = vunpack.c.l.b16 %v479
        %v528 = vunpack.c.l.b16 %v480
        %v529 = vunpack.c.l.b16 %v481
        %v530 = vunpack.c.l.b16 %v482
        %v531 = vunpack.c.l.b16 %v483
        %v532 = vunpack.c.l.b16 %v484
        %v533 = vunpack.c.l.b16 %v485
        %v534 = vunpack.c.l.b16 %v486
        %v535 = vunpack.c.l.b16 %v487
        %v536 = vunpack.c.l.b16 %v488
        %v537 = vunpack.c.l.b16 %v489
        %v538 = vunpack.c.l.b16 %v490
        %v539 = vpack.c.b16 %v524, %v523
        %v540 = vpack.c.b16 %v526, %v525
        %v541 = vpack.c.b16 %v528, %v527
        %v542 = vpack.c.b16 %v530, %v529
        %v543 = vpack.c.b16 %v532, %v531
        %v544 = vpack.c.b16 %v534, %v533
        %v545 = vpack.c.b16 %v536, %v535
        %v546 = vpack.c.b16 %v538, %v537
        %v571 = vunpack.c.l.b16 %v491
        %v572 = vunpack.c.l.b16 %v492
        %v573 = vunpack.c.l.b16 %v493
        %v574 = vunpack.c.l.b16 %v494
        %v575 = vunpack.c.l.b16 %v495
        %v576 = vunpack.c.l.b16 %v496
        %v577 = vunpack.c.l.b16 %v497
        %v578 = vunpack.c.l.b16 %v498
        %v579 = vunpack.c.l.b16 %v499
        %v580 = vunpack.c.l.b16 %v500
        %v581 = vunpack.c.l.b16 %v501
        %v582 = vunpack.c.l.b16 %v502
        %v583 = vunpack.c.l.b16 %v503
        %v584 = vunpack.c.l.b16 %v504
        %v585 = vunpack.c.l.b16 %v505
        %v586 = vunpack.c.l.b16 %v506
        %v587 = vpack.c.b16 %v572, %v571
        %v588 = vpack.c.b16 %v574, %v573
        %v589 = vpack.c.b16 %v576, %v575
        %v590 = vpack.c.b16 %v578, %v577
        %v591 = vpack.c.b16 %v580, %v579
        %v592 = vpack.c.b16 %v582, %v581
        %v593 = vpack.c.b16 %v584, %v583
        %v594 = vpack.c.b16 %v586, %v585
        %603 = vmatprep.subr.bf16.mxu0 0
        %604 = vmatpush1.bf16.msra.mxu0 %v587
        %605 = vmatprep.subr.bf16.mxu0 0
        %606 = vmatpush1.bf16.msra.mxu0 %v588
        %607 = vmatprep.subr.bf16.mxu0 0
        %608 = vmatpush1.bf16.msra.mxu0 %v589
        %609 = vmatprep.subr.bf16.mxu0 0
        %610 = vmatpush1.bf16.msra.mxu0 %v590
        %611 = vmatprep.subr.bf16.mxu0 0
        %612 = vmatpush1.bf16.msra.mxu0 %v591
        %613 = vmatprep.subr.bf16.mxu0 0
        %614 = vmatpush1.bf16.msra.mxu0 %v592
        %615 = vmatprep.subr.bf16.mxu0 0
        %616 = vmatpush1.bf16.msra.mxu0 %v593
        %617 = vmatprep.subr.bf16.mxu0 0
        %618 = vmatpush1.bf16.msra.mxu0 %v594
        %619 = vmatprep.subr.bf16.mxu0 0
        %620 = vmatpush1.bf16.msra.mxu0 0
        %621 = vmatprep.subr.bf16.mxu0 0
        %622 = vmatpush1.bf16.msra.mxu0 0
        %623 = vmatprep.subr.bf16.mxu0 0
        %624 = vmatpush1.bf16.msra.mxu0 0
        %625 = vmatprep.subr.bf16.mxu0 0
        %626 = vmatpush1.bf16.msra.mxu0 0
        %627 = vmatprep.subr.bf16.mxu0 0
        %628 = vmatpush1.bf16.msra.mxu0 0
        %629 = vmatprep.subr.bf16.mxu0 0
        %630 = vmatpush1.bf16.msra.mxu0 0
        %631 = vmatprep.subr.bf16.mxu0 0
        %632 = vmatpush1.bf16.msra.mxu0 0
        %633 = vmatprep.subr.bf16.mxu0 0
        %634 = vmatpush1.bf16.msra.mxu0 0
        %635 = vmatprep.mubr.bf16.mxu0 0
        %636 = vmatmul.mubr.bf16.gmra.mrb[0].mxu0 %v539
        %v637 = vpop.f32.mrb[0].mxu0
        %v638 = vadd.f32 0.0, %v637
        %v639 = vpop.f32.mrb[0].mxu0
        %v640 = vpop.f32.mrb[0].mxu0
        %v641 = vadd.f32 0.0, %v640
        %v642 = vpop.f32.mrb[0].mxu0
        %643 = vmatprep.mubr.bf16.mxu0 0
        %644 = vmatmul.mubr.bf16.gmra.mrb[0].mxu0 %v540
        %v645 = vpop.f32.mrb[0].mxu0
        %v646 = vadd.f32 0.0, %v645
        %v647 = vpop.f32.mrb[0].mxu0
        %v648 = vpop.f32.mrb[0].mxu0
        %v649 = vadd.f32 0.0, %v648
        %v650 = vpop.f32.mrb[0].mxu0
        %651 = vmatprep.mubr.bf16.mxu0 0
        %652 = vmatmul.mubr.bf16.gmra.mrb[0].mxu0 %v541
        %v653 = vpop.f32.mrb[0].mxu0
        %v654 = vadd.f32 0.0, %v653
        %v655 = vpop.f32.mrb[0].mxu0
        %v656 = vpop.f32.mrb[0].mxu0
        %v657 = vadd.f32 0.0, %v656
        %v658 = vpop.f32.mrb[0].mxu0
        %659 = vmatprep.mubr.bf16.mxu0 0
        %660 = vmatmul.mubr.bf16.gmra.mrb[0].mxu0 %v542
        %v661 = vpop.f32.mrb[0].mxu0
        %v662 = vadd.f32 0.0, %v661
        %v663 = vpop.f32.mrb[0].mxu0
        %v664 = vpop.f32.mrb[0].mxu0
        %v665 = vadd.f32 0.0, %v664
        %v666 = vpop.f32.mrb[0].mxu0
        %667 = vmatprep.mubr.bf16.mxu0 0
        %668 = vmatmul.mubr.bf16.gmra.mrb[0].mxu0 %v543
        %v669 = vpop.f32.mrb[0].mxu0
        %v670 = vadd.f32 0.0, %v669
        %v671 = vpop.f32.mrb[0].mxu0
        %v672 = vpop.f32.mrb[0].mxu0
        %v673 = vadd.f32 0.0, %v672
        %v674 = vpop.f32.mrb[0].mxu0
        %675 = vmatprep.mubr.bf16.mxu0 0
        %676 = vmatmul.mubr.bf16.gmra.mrb[0].mxu0 %v544
        %v677 = vpop.f32.mrb[0].mxu0
        %v678 = vadd.f32 0.0, %v677
        %v679 = vpop.f32.mrb[0].mxu0
        %v680 = vpop.f32.mrb[0].mxu0
        %v681 = vadd.f32 0.0, %v680
        %v682 = vpop.f32.mrb[0].mxu0
        %683 = vmatprep.mubr.bf16.mxu0 0
        %684 = vmatmul.mubr.bf16.gmra.mrb[0].mxu0 %v545
        %v685 = vpop.f32.mrb[0].mxu0
        %v686 = vadd.f32 0.0, %v685
        %v687 = vpop.f32.mrb[0].mxu0
        %v688 = vpop.f32.mrb[0].mxu0
        %v689 = vadd.f32 0.0, %v688
        %v690 = vpop.f32.mrb[0].mxu0
        %691 = vmatprep.mubr.bf16.mxu0 0
        %692 = vmatmul.mubr.bf16.gmra.mrb[0].mxu0 %v546
        %v693 = vpop.f32.mrb[0].mxu0
        %v694 = vadd.f32 0.0, %v693
        %v695 = vpop.f32.mrb[0].mxu0
        %v696 = vpop.f32.mrb[0].mxu0
        %v697 = vadd.f32 0.0, %v696
        %v698 = vpop.f32.mrb[0].mxu0
        %699 = vdwg.mxu0
        %v700 = vadd.f32 %v459, %v638
        %v701 = vadd.f32 %v460, %v641
        %v702 = vadd.f32 %v461, %v646
        %v703 = vadd.f32 %v462, %v649
        %v704 = vadd.f32 %v463, %v654
        %v705 = vadd.f32 %v464, %v657
        %v706 = vadd.f32 %v465, %v662
        %v707 = vadd.f32 %v466, %v665
        %v708 = vadd.f32 %v467, %v670
        %v709 = vadd.f32 %v468, %v673
        %v710 = vadd.f32 %v469, %v678
        %v711 = vadd.f32 %v470, %v681
        %v712 = vadd.f32 %v471, %v686
        %v713 = vadd.f32 %v472, %v689
        %v714 = vadd.f32 %v473, %v694
        %v715 = vadd.f32 %v474, %v697
        %716 = vst [vmem:[#allocation2] sm:$0xff] %v700
        %717 = vst [vmem:[#allocation2 + $0x8] sm:$0xff] %v701
        %718 = vst [vmem:[#allocation2 + $0x10] sm:$0xff] %v702
        %719 = vst [vmem:[#allocation2 + $0x18] sm:$0xff] %v703
        %720 = vst [vmem:[#allocation2 + $0x20] sm:$0xff] %v704
        %721 = vst [vmem:[#allocation2 + $0x28] sm:$0xff] %v705
        %722 = vst [vmem:[#allocation2 + $0x30] sm:$0xff] %v706
        %723 = vst [vmem:[#allocation2 + $0x38] sm:$0xff] %v707
        %724 = vst [vmem:[#allocation2 + $0x40] sm:$0xff] %v708
        %725 = vst [vmem:[#allocation2 + $0x48] sm:$0xff] %v709
        %726 = vst [vmem:[#allocation2 + $0x50] sm:$0xff] %v710
        %727 = vst [vmem:[#allocation2 + $0x58] sm:$0xff] %v711
        %728 = vst [vmem:[#allocation2 + $0x60] sm:$0xff] %v712
        %729 = vst [vmem:[#allocation2 + $0x68] sm:$0xff] %v713
        %730 = vst [vmem:[#allocation2 + $0x70] sm:$0xff] %v714
        %731 = vst [vmem:[#allocation2 + $0x78] sm:$0xff] %v715
        %p732 = scmp.eq.s32.totalorder %s22, 2
        // Predicated region
        $region90: #{edge_graph_sage_forward.3} parent=80 // pred_check
          %p733 = pneg %p732
        $region91: #{edge_graph_sage_forward.3} parent=80 // pred_check_branch
          %735 = sbr.rel (%p733) target = $region93
        $region92: #{edge_graph_sage_forward.3} parent=80 // pred_region
          %v736 = vld [vmem:[#allocation2] sm:$0xff]
          %v737 = vld [vmem:[#allocation2 + $0x8] sm:$0xff]
          %v738 = vld [vmem:[#allocation2 + $0x10] sm:$0xff]
          %v739 = vld [vmem:[#allocation2 + $0x18] sm:$0xff]
          %v740 = vld [vmem:[#allocation2 + $0x20] sm:$0xff]
          %v741 = vld [vmem:[#allocation2 + $0x28] sm:$0xff]
          %v742 = vld [vmem:[#allocation2 + $0x30] sm:$0xff]
          %v743 = vld [vmem:[#allocation2 + $0x38] sm:$0xff]
          %v744 = vld [vmem:[#allocation2 + $0x40] sm:$0xff]
          %v745 = vld [vmem:[#allocation2 + $0x48] sm:$0xff]
          %v746 = vld [vmem:[#allocation2 + $0x50] sm:$0xff]
          %v747 = vld [vmem:[#allocation2 + $0x58] sm:$0xff]
          %v748 = vld [vmem:[#allocation2 + $0x60] sm:$0xff]
          %v749 = vld [vmem:[#allocation2 + $0x68] sm:$0xff]
          %v750 = vld [vmem:[#allocation2 + $0x70] sm:$0xff]
          %v751 = vld [vmem:[#allocation2 + $0x78] sm:$0xff]
          %v752 = vld [vmem:[%s430] sm:$0xff]
          %v753 = vld [vmem:[%s430 + $0x8] sm:$0xff]
          %v754 = vld [vmem:[%s430 + $0x10] sm:$0xff]
          %v755 = vld [vmem:[%s430 + $0x18] sm:$0xff]
          %v756 = vld [vmem:[%s430 + $0x20] sm:$0xff]
          %v757 = vld [vmem:[%s430 + $0x28] sm:$0xff]
          %v758 = vld [vmem:[%s430 + $0x30] sm:$0xff]
          %v759 = vld [vmem:[%s430 + $0x38] sm:$0xff]
          %v760 = vld [vmem:[%s430 + $0x40] sm:$0xff]
          %v761 = vld [vmem:[%s430 + $0x48] sm:$0xff]
          %v762 = vld [vmem:[%s430 + $0x50] sm:$0xff]
          %v763 = vld [vmem:[%s430 + $0x58] sm:$0xff]
          %v764 = vld [vmem:[%s430 + $0x60] sm:$0xff]
          %v765 = vld [vmem:[%s430 + $0x68] sm:$0xff]
          %v766 = vld [vmem:[%s430 + $0x70] sm:$0xff]
          %v767 = vld [vmem:[%s430 + $0x78] sm:$0xff]
          %769 = vset.pattern.permute.xlu0 0
          %770 = vperm.xlu0 %769, %v752
          %v771 = vpop.permute.xlu0 %770
          %774 = vset.pattern.permute.xlu0 0
          %775 = vperm.xlu0 %774, %v753
          %v776 = vpop.permute.xlu0 %775
          %779 = vset.pattern.permute.xlu0 0
          %780 = vperm.xlu0 %779, %v754
          %v781 = vpop.permute.xlu0 %780
          %784 = vset.pattern.permute.xlu0 0
          %785 = vperm.xlu0 %784, %v755
          %v786 = vpop.permute.xlu0 %785
          %789 = vset.pattern.permute.xlu0 0
          %790 = vperm.xlu0 %789, %v756
          %v791 = vpop.permute.xlu0 %790
          %794 = vset.pattern.permute.xlu0 0
          %795 = vperm.xlu0 %794, %v757
          %v796 = vpop.permute.xlu0 %795
          %799 = vset.pattern.permute.xlu0 0
          %800 = vperm.xlu0 %799, %v758
          %v801 = vpop.permute.xlu0 %800
          %804 = vset.pattern.permute.xlu0 0
          %805 = vperm.xlu0 %804, %v759
          %v806 = vpop.permute.xlu0 %805
          %809 = vset.pattern.permute.xlu0 0
          %810 = vperm.xlu0 %809, %v760
          %v811 = vpop.permute.xlu0 %810
          %814 = vset.pattern.permute.xlu0 0
          %815 = vperm.xlu0 %814, %v761
          %v816 = vpop.permute.xlu0 %815
          %819 = vset.pattern.permute.xlu0 0
          %820 = vperm.xlu0 %819, %v762
          %v821 = vpop.permute.xlu0 %820
          %824 = vset.pattern.permute.xlu0 0
          %825 = vperm.xlu0 %824, %v763
          %v826 = vpop.permute.xlu0 %825
          %829 = vset.pattern.permute.xlu0 0
          %830 = vperm.xlu0 %829, %v764
          %v831 = vpop.permute.xlu0 %830
          %834 = vset.pattern.permute.xlu0 0
          %835 = vperm.xlu0 %834, %v765
          %v836 = vpop.permute.xlu0 %835
          %839 = vset.pattern.permute.xlu0 0
          %840 = vperm.xlu0 %839, %v766
          %v841 = vpop.permute.xlu0 %840
          %844 = vset.pattern.permute.xlu0 0
          %845 = vperm.xlu0 %844, %v767
          %v846 = vpop.permute.xlu0 %845
          %v848 = vmul.f32 %v736, %v771
          %v849 = vmul.f32 %v737, %v776
          %v850 = vmul.f32 %v738, %v781
          %v851 = vmul.f32 %v739, %v786
          %v852 = vmul.f32 %v740, %v791
          %v853 = vmul.f32 %v741, %v796
          %v854 = vmul.f32 %v742, %v801
          %v855 = vmul.f32 %v743, %v806
          %v856 = vmul.f32 %v744, %v811
          %v857 = vmul.f32 %v745, %v816
          %v858 = vmul.f32 %v746, %v821
          %v859 = vmul.f32 %v747, %v826
          %v860 = vmul.f32 %v748, %v831
          %v861 = vmul.f32 %v749, %v836
          %v862 = vmul.f32 %v750, %v841
          %v863 = vmul.f32 %v751, %v846
          %v864 = vpack.c.bf16 %v849, %v848
          %v865 = vpack.c.bf16 %v851, %v850
          %v866 = vpack.c.bf16 %v853, %v852
          %v867 = vpack.c.bf16 %v855, %v854
          %v868 = vpack.c.bf16 %v857, %v856
          %v869 = vpack.c.bf16 %v859, %v858
          %v870 = vpack.c.bf16 %v861, %v860
          %v871 = vpack.c.bf16 %v863, %v862
          %872 = vst [vmem:[#allocation3] sm:$0xff] %v864
          %873 = vst [vmem:[#allocation3 + $0x10] sm:$0xff] %v865
          %874 = vst [vmem:[#allocation3 + $0x20] sm:$0xff] %v866
          %875 = vst [vmem:[#allocation3 + $0x30] sm:$0xff] %v867
          %876 = vst [vmem:[#allocation3 + $0x40] sm:$0xff] %v868
          %877 = vst [vmem:[#allocation3 + $0x50] sm:$0xff] %v869
          %878 = vst [vmem:[#allocation3 + $0x60] sm:$0xff] %v870
          %879 = vst [vmem:[#allocation3 + $0x70] sm:$0xff] %v871
          %v880 = vld [vmem:[%s424] sm:$0xf]
          %v881 = vld [vmem:[%s424 + $0x4] sm:$0xf]
          %v882 = vld [vmem:[%s424 + $0x8] sm:$0xf]
          %v883 = vld [vmem:[%s424 + $0xc] sm:$0xf]
          %v884 = vld [vmem:[%s424 + $0x10] sm:$0xf]
          %v885 = vld [vmem:[%s424 + $0x14] sm:$0xf]
          %v886 = vld [vmem:[%s424 + $0x18] sm:$0xf]
          %v887 = vld [vmem:[%s424 + $0x1c] sm:$0xf]
          %v888 = vld [vmem:[%s424 + $0x20] sm:$0xf]
          %v889 = vld [vmem:[%s424 + $0x24] sm:$0xf]
          %v890 = vld [vmem:[%s424 + $0x28] sm:$0xf]
          %v891 = vld [vmem:[%s424 + $0x2c] sm:$0xf]
          %v892 = vld [vmem:[%s424 + $0x30] sm:$0xf]
          %v893 = vld [vmem:[%s424 + $0x34] sm:$0xf]
          %v894 = vld [vmem:[%s424 + $0x38] sm:$0xf]
          %v895 = vld [vmem:[%s424 + $0x3c] sm:$0xf]
          %v912 = vunpack.c.l.b16 %v880
          %v913 = vunpack.c.l.b16 %v881
          %v914 = vunpack.c.l.b16 %v882
          %v915 = vunpack.c.l.b16 %v883
          %v916 = vunpack.c.l.b16 %v884
          %v917 = vunpack.c.l.b16 %v885
          %v918 = vunpack.c.l.b16 %v886
          %v919 = vunpack.c.l.b16 %v887
          %v920 = vunpack.c.l.b16 %v888
          %v921 = vunpack.c.l.b16 %v889
          %v922 = vunpack.c.l.b16 %v890
          %v923 = vunpack.c.l.b16 %v891
          %v924 = vunpack.c.l.b16 %v892
          %v925 = vunpack.c.l.b16 %v893
          %v926 = vunpack.c.l.b16 %v894
          %v927 = vunpack.c.l.b16 %v895
          %v928 = vpack.c.b16 %v913, %v912
          %v929 = vpack.c.b16 %v915, %v914
          %v930 = vpack.c.b16 %v917, %v916
          %v931 = vpack.c.b16 %v919, %v918
          %v932 = vpack.c.b16 %v921, %v920
          %v933 = vpack.c.b16 %v923, %v922
          %v934 = vpack.c.b16 %v925, %v924
          %v935 = vpack.c.b16 %v927, %v926
          %944 = vst [vmem:[#allocation3 + $0x8] sm:$0xff] %v928
          %945 = vst [vmem:[#allocation3 + $0x18] sm:$0xff] %v929
          %946 = vst [vmem:[#allocation3 + $0x28] sm:$0xff] %v930
          %947 = vst [vmem:[#allocation3 + $0x38] sm:$0xff] %v931
          %948 = vst [vmem:[#allocation3 + $0x48] sm:$0xff] %v932
          %949 = vst [vmem:[#allocation3 + $0x58] sm:$0xff] %v933
          %950 = vst [vmem:[#allocation3 + $0x68] sm:$0xff] %v934
          %951 = vst [vmem:[#allocation3 + $0x78] sm:$0xff] %v935
          %v952 = vld [vmem:[#allocation3] sm:$0xff]
          %v953 = vld [vmem:[#allocation3 + $0x8] sm:$0xff]
          %v954 = vld [vmem:[#allocation3 + $0x10] sm:$0xff]
          %v955 = vld [vmem:[#allocation3 + $0x18] sm:$0xff]
          %v956 = vld [vmem:[#allocation3 + $0x20] sm:$0xff]
          %v957 = vld [vmem:[#allocation3 + $0x28] sm:$0xff]
          %v958 = vld [vmem:[#allocation3 + $0x30] sm:$0xff]
          %v959 = vld [vmem:[#allocation3 + $0x38] sm:$0xff]
          %v960 = vld [vmem:[#allocation3 + $0x40] sm:$0xff]
          %v961 = vld [vmem:[#allocation3 + $0x48] sm:$0xff]
          %v962 = vld [vmem:[#allocation3 + $0x50] sm:$0xff]
          %v963 = vld [vmem:[#allocation3 + $0x58] sm:$0xff]
          %v964 = vld [vmem:[#allocation3 + $0x60] sm:$0xff]
          %v965 = vld [vmem:[#allocation3 + $0x68] sm:$0xff]
          %v966 = vld [vmem:[#allocation3 + $0x70] sm:$0xff]
          %v967 = vld [vmem:[#allocation3 + $0x78] sm:$0xff]
          %v968 = vld [vmem:[%s4] sm:$0xf]
          %v969 = vld [vmem:[%s4 + $0x4] sm:$0xf]
          %v970 = vld [vmem:[%s4 + $0x8] sm:$0xf]
          %v971 = vld [vmem:[%s4 + $0xc] sm:$0xf]
          %v972 = vld [vmem:[%s4 + $0x10] sm:$0xf]
          %v973 = vld [vmem:[%s4 + $0x14] sm:$0xf]
          %v974 = vld [vmem:[%s4 + $0x18] sm:$0xf]
          %v975 = vld [vmem:[%s4 + $0x1c] sm:$0xf]
          %v976 = vld [vmem:[%s4 + $0x20] sm:$0xf]
          %v977 = vld [vmem:[%s4 + $0x24] sm:$0xf]
          %v978 = vld [vmem:[%s4 + $0x28] sm:$0xf]
          %v979 = vld [vmem:[%s4 + $0x2c] sm:$0xf]
          %v980 = vld [vmem:[%s4 + $0x30] sm:$0xf]
          %v981 = vld [vmem:[%s4 + $0x34] sm:$0xf]
          %v982 = vld [vmem:[%s4 + $0x38] sm:$0xf]
          %v983 = vld [vmem:[%s4 + $0x3c] sm:$0xf]
          %v984 = vld [vmem:[%s4 + $0x40] sm:$0xf]
          %v985 = vld [vmem:[%s4 + $0x44] sm:$0xf]
          %v986 = vld [vmem:[%s4 + $0x48] sm:$0xf]
          %v987 = vld [vmem:[%s4 + $0x4c] sm:$0xf]
          %v988 = vld [vmem:[%s4 + $0x50] sm:$0xf]
          %v989 = vld [vmem:[%s4 + $0x54] sm:$0xf]
          %v990 = vld [vmem:[%s4 + $0x58] sm:$0xf]
          %v991 = vld [vmem:[%s4 + $0x5c] sm:$0xf]
          %v992 = vld [vmem:[%s4 + $0x60] sm:$0xf]
          %v993 = vld [vmem:[%s4 + $0x64] sm:$0xf]
          %v994 = vld [vmem:[%s4 + $0x68] sm:$0xf]
          %v995 = vld [vmem:[%s4 + $0x6c] sm:$0xf]
          %v996 = vld [vmem:[%s4 + $0x70] sm:$0xf]
          %v997 = vld [vmem:[%s4 + $0x74] sm:$0xf]
          %v998 = vld [vmem:[%s4 + $0x78] sm:$0xf]
          %v999 = vld [vmem:[%s4 + $0x7c] sm:$0xf]
          %v1000 = vld [vmem:[%s5] sm:$0x1]
          %v1002 = vlaneseq
          %v1003 = vshrl.u32 %v1002, 7
          %v1004 = vsub.s32 0, %v1003
          %v1005 = vrot.slane %v1000, %v1004
          %v1039 = vunpack.c.l.b16 %v968
          %v1040 = vunpack.c.l.b16 %v969
          %v1041 = vunpack.c.l.b16 %v970
          %v1042 = vunpack.c.l.b16 %v971
          %v1043 = vunpack.c.l.b16 %v972
          %v1044 = vunpack.c.l.b16 %v973
          %v1045 = vunpack.c.l.b16 %v974
          %v1046 = vunpack.c.l.b16 %v975
          %v1047 = vunpack.c.l.b16 %v976
          %v1048 = vunpack.c.l.b16 %v977
          %v1049 = vunpack.c.l.b16 %v978
          %v1050 = vunpack.c.l.b16 %v979
          %v1051 = vunpack.c.l.b16 %v980
          %v1052 = vunpack.c.l.b16 %v981
          %v1053 = vunpack.c.l.b16 %v982
          %v1054 = vunpack.c.l.b16 %v983
          %v1055 = vunpack.c.l.b16 %v984
          %v1056 = vunpack.c.l.b16 %v985
          %v1057 = vunpack.c.l.b16 %v986
          %v1058 = vunpack.c.l.b16 %v987
          %v1059 = vunpack.c.l.b16 %v988
          %v1060 = vunpack.c.l.b16 %v989
          %v1061 = vunpack.c.l.b16 %v990
          %v1062 = vunpack.c.l.b16 %v991
          %v1063 = vunpack.c.l.b16 %v992
          %v1064 = vunpack.c.l.b16 %v993
          %v1065 = vunpack.c.l.b16 %v994
          %v1066 = vunpack.c.l.b16 %v995
          %v1067 = vunpack.c.l.b16 %v996
          %v1068 = vunpack.c.l.b16 %v997
          %v1069 = vunpack.c.l.b16 %v998
          %v1070 = vunpack.c.l.b16 %v999
          %v1071 = vpack.c.b16 %v1040, %v1039
          %v1072 = vpack.c.b16 %v1042, %v1041
          %v1073 = vpack.c.b16 %v1044, %v1043
          %v1074 = vpack.c.b16 %v1046, %v1045
          %v1075 = vpack.c.b16 %v1048, %v1047
          %v1076 = vpack.c.b16 %v1050, %v1049
          %v1077 = vpack.c.b16 %v1052, %v1051
          %v1078 = vpack.c.b16 %v1054, %v1053
          %v1079 = vpack.c.b16 %v1056, %v1055
          %v1080 = vpack.c.b16 %v1058, %v1057
          %v1081 = vpack.c.b16 %v1060, %v1059
          %v1082 = vpack.c.b16 %v1062, %v1061
          %v1083 = vpack.c.b16 %v1064, %v1063
          %v1084 = vpack.c.b16 %v1066, %v1065
          %v1085 = vpack.c.b16 %v1068, %v1067
          %v1086 = vpack.c.b16 %v1070, %v1069
          %1103 = vmatprep.subr.bf16.mxu0 0
          %1104 = vmatpush1.bf16.msra.mxu0 %v1071
          %1105 = vmatprep.subr.bf16.mxu0 0
          %1106 = vmatpush1.bf16.msra.mxu0 %v1072
          %1107 = vmatprep.subr.bf16.mxu0 0
          %1108 = vmatpush1.bf16.msra.mxu0 %v1073
          %1109 = vmatprep.subr.bf16.mxu0 0
          %1110 = vmatpush1.bf16.msra.mxu0 %v1074
          %1111 = vmatprep.subr.bf16.mxu0 0
          %1112 = vmatpush1.bf16.msra.mxu0 %v1075
          %1113 = vmatprep.subr.bf16.mxu0 0
          %1114 = vmatpush1.bf16.msra.mxu0 %v1076
          %1115 = vmatprep.subr.bf16.mxu0 0
          %1116 = vmatpush1.bf16.msra.mxu0 %v1077
          %1117 = vmatprep.subr.bf16.mxu0 0
          %1118 = vmatpush1.bf16.msra.mxu0 %v1078
          %1119 = vmatprep.subr.bf16.mxu0 0
          %1120 = vmatpush1.bf16.msra.mxu0 %v1079
          %1121 = vmatprep.subr.bf16.mxu0 0
          %1122 = vmatpush1.bf16.msra.mxu0 %v1080
          %1123 = vmatprep.subr.bf16.mxu0 0
          %1124 = vmatpush1.bf16.msra.mxu0 %v1081
          %1125 = vmatprep.subr.bf16.mxu0 0
          %1126 = vmatpush1.bf16.msra.mxu0 %v1082
          %1127 = vmatprep.subr.bf16.mxu0 0
          %1128 = vmatpush1.bf16.msra.mxu0 %v1083
          %1129 = vmatprep.subr.bf16.mxu0 0
          %1130 = vmatpush1.bf16.msra.mxu0 %v1084
          %1131 = vmatprep.subr.bf16.mxu0 0
          %1132 = vmatpush1.bf16.msra.mxu0 %v1085
          %1133 = vmatprep.subr.bf16.mxu0 0
          %1134 = vmatpush1.bf16.msra.mxu0 %v1086
          %1135 = vmatprep.mubr.bf16.mxu0 %v953
          %1136 = vmatmul.mubr.bf16.gmra.mrb[0].mxu0 %v952
          %v1137 = vpop.f32.mrb[0].mxu0
          %v1138 = vadd.f32 %v1005, %v1137
          %v1139 = vpop.f32.mrb[0].mxu0
          %v1140 = vpop.f32.mrb[0].mxu0
          %v1141 = vadd.f32 %v1005, %v1140
          %v1142 = vpop.f32.mrb[0].mxu0
          %1143 = vmatprep.mubr.bf16.mxu0 %v955
          %1144 = vmatmul.mubr.bf16.gmra.mrb[0].mxu0 %v954
          %v1145 = vpop.f32.mrb[0].mxu0
          %v1146 = vadd.f32 %v1005, %v1145
          %v1147 = vpop.f32.mrb[0].mxu0
          %v1148 = vpop.f32.mrb[0].mxu0
          %v1149 = vadd.f32 %v1005, %v1148
          %v1150 = vpop.f32.mrb[0].mxu0
          %1151 = vmatprep.mubr.bf16.mxu0 %v957
          %1152 = vmatmul.mubr.bf16.gmra.mrb[0].mxu0 %v956
          %v1153 = vpop.f32.mrb[0].mxu0
          %v1154 = vadd.f32 %v1005, %v1153
          %v1155 = vpop.f32.mrb[0].mxu0
          %v1156 = vpop.f32.mrb[0].mxu0
          %v1157 = vadd.f32 %v1005, %v1156
          %v1158 = vpop.f32.mrb[0].mxu0
          %1159 = vmatprep.mubr.bf16.mxu0 %v959
          %1160 = vmatmul.mubr.bf16.gmra.mrb[0].mxu0 %v958
          %v1161 = vpop.f32.mrb[0].mxu0
          %v1162 = vadd.f32 %v1005, %v1161
          %v1163 = vpop.f32.mrb[0].mxu0
          %v1164 = vpop.f32.mrb[0].mxu0
          %v1165 = vadd.f32 %v1005, %v1164
          %v1166 = vpop.f32.mrb[0].mxu0
          %1167 = vmatprep.mubr.bf16.mxu0 %v961
          %1168 = vmatmul.mubr.bf16.gmra.mrb[0].mxu0 %v960
          %v1169 = vpop.f32.mrb[0].mxu0
          %v1170 = vadd.f32 %v1005, %v1169
          %v1171 = vpop.f32.mrb[0].mxu0
          %v1172 = vpop.f32.mrb[0].mxu0
          %v1173 = vadd.f32 %v1005, %v1172
          %v1174 = vpop.f32.mrb[0].mxu0
          %1175 = vmatprep.mubr.bf16.mxu0 %v963
          %1176 = vmatmul.mubr.bf16.gmra.mrb[0].mxu0 %v962
          %v1177 = vpop.f32.mrb[0].mxu0
          %v1178 = vadd.f32 %v1005, %v1177
          %v1179 = vpop.f32.mrb[0].mxu0
          %v1180 = vpop.f32.mrb[0].mxu0
          %v1181 = vadd.f32 %v1005, %v1180
          %v1182 = vpop.f32.mrb[0].mxu0
          %1183 = vmatprep.mubr.bf16.mxu0 %v965
          %1184 = vmatmul.mubr.bf16.gmra.mrb[0].mxu0 %v964
          %v1185 = vpop.f32.mrb[0].mxu0
          %v1186 = vadd.f32 %v1005, %v1185
          %v1187 = vpop.f32.mrb[0].mxu0
          %v1188 = vpop.f32.mrb[0].mxu0
          %v1189 = vadd.f32 %v1005, %v1188
          %v1190 = vpop.f32.mrb[0].mxu0
          %1191 = vmatprep.mubr.bf16.mxu0 %v967
          %1192 = vmatmul.mubr.bf16.gmra.mrb[0].mxu0 %v966
          %v1193 = vpop.f32.mrb[0].mxu0
          %v1194 = vadd.f32 %v1005, %v1193
          %v1195 = vpop.f32.mrb[0].mxu0
          %v1196 = vpop.f32.mrb[0].mxu0
          %v1197 = vadd.f32 %v1005, %v1196
          %v1198 = vpop.f32.mrb[0].mxu0
          %1199 = vdwg.mxu0
          %vm1200 = vcmp.ne.f32.partialorder %v1138, %v1138
          %vm1201 = vcmp.ne.f32.partialorder %v1141, %v1141
          %vm1202 = vcmp.ne.f32.partialorder %v1146, %v1146
          %vm1203 = vcmp.ne.f32.partialorder %v1149, %v1149
          %vm1204 = vcmp.ne.f32.partialorder %v1154, %v1154
          %vm1205 = vcmp.ne.f32.partialorder %v1157, %v1157
          %vm1206 = vcmp.ne.f32.partialorder %v1162, %v1162
          %vm1207 = vcmp.ne.f32.partialorder %v1165, %v1165
          %vm1208 = vcmp.ne.f32.partialorder %v1170, %v1170
          %vm1209 = vcmp.ne.f32.partialorder %v1173, %v1173
          %vm1210 = vcmp.ne.f32.partialorder %v1178, %v1178
          %vm1211 = vcmp.ne.f32.partialorder %v1181, %v1181
          %vm1212 = vcmp.ne.f32.partialorder %v1186, %v1186
          %vm1213 = vcmp.ne.f32.partialorder %v1189, %v1189
          %vm1214 = vcmp.ne.f32.partialorder %v1194, %v1194
          %vm1215 = vcmp.ne.f32.partialorder %v1197, %v1197
          %v1216 = vsel %vm1200, 0.0, %v1138
          %v1217 = vsel %vm1201, 0.0, %v1141
          %v1218 = vsel %vm1202, 0.0, %v1146
          %v1219 = vsel %vm1203, 0.0, %v1149
          %v1220 = vsel %vm1204, 0.0, %v1154
          %v1221 = vsel %vm1205, 0.0, %v1157
          %v1222 = vsel %vm1206, 0.0, %v1162
          %v1223 = vsel %vm1207, 0.0, %v1165
          %v1224 = vsel %vm1208, 0.0, %v1170
          %v1225 = vsel %vm1209, 0.0, %v1173
          %v1226 = vsel %vm1210, 0.0, %v1178
          %v1227 = vsel %vm1211, 0.0, %v1181
          %v1228 = vsel %vm1212, 0.0, %v1186
          %v1229 = vsel %vm1213, 0.0, %v1189
          %v1230 = vsel %vm1214, 0.0, %v1194
          %v1231 = vsel %vm1215, 0.0, %v1197
          %v1232 = vmax.f32 %v1216, -3.4028235e+38
          %v1233 = vmax.f32 %v1217, -3.4028235e+38
          %v1234 = vmax.f32 %v1218, -3.4028235e+38
          %v1235 = vmax.f32 %v1219, -3.4028235e+38
          %v1236 = vmax.f32 %v1220, -3.4028235e+38
          %v1237 = vmax.f32 %v1221, -3.4028235e+38
          %v1238 = vmax.f32 %v1222, -3.4028235e+38
          %v1239 = vmax.f32 %v1223, -3.4028235e+38
          %v1240 = vmax.f32 %v1224, -3.4028235e+38
          %v1241 = vmax.f32 %v1225, -3.4028235e+38
          %v1242 = vmax.f32 %v1226, -3.4028235e+38
          %v1243 = vmax.f32 %v1227, -3.4028235e+38
          %v1244 = vmax.f32 %v1228, -3.4028235e+38
          %v1245 = vmax.f32 %v1229, -3.4028235e+38
          %v1246 = vmax.f32 %v1230, -3.4028235e+38
          %v1247 = vmax.f32 %v1231, -3.4028235e+38
          %v1248 = vmin.f32 %v1232, 3.4028235e+38
          %v1249 = vmin.f32 %v1233, 3.4028235e+38
          %v1250 = vmin.f32 %v1234, 3.4028235e+38
          %v1251 = vmin.f32 %v1235, 3.4028235e+38
          %v1252 = vmin.f32 %v1236, 3.4028235e+38
          %v1253 = vmin.f32 %v1237, 3.4028235e+38
          %v1254 = vmin.f32 %v1238, 3.4028235e+38
          %v1255 = vmin.f32 %v1239, 3.4028235e+38
          %v1256 = vmin.f32 %v1240, 3.4028235e+38
          %v1257 = vmin.f32 %v1241, 3.4028235e+38
          %v1258 = vmin.f32 %v1242, 3.4028235e+38
          %v1259 = vmin.f32 %v1243, 3.4028235e+38
          %v1260 = vmin.f32 %v1244, 3.4028235e+38
          %v1261 = vmin.f32 %v1245, 3.4028235e+38
          %v1262 = vmin.f32 %v1246, 3.4028235e+38
          %v1263 = vmin.f32 %v1247, 3.4028235e+38
          %v1264 = vmax.f32 %v1248, 0.0
          %v1265 = vmax.f32 %v1249, 0.0
          %v1266 = vmax.f32 %v1250, 0.0
          %v1267 = vmax.f32 %v1251, 0.0
          %v1268 = vmax.f32 %v1252, 0.0
          %v1269 = vmax.f32 %v1253, 0.0
          %v1270 = vmax.f32 %v1254, 0.0
          %v1271 = vmax.f32 %v1255, 0.0
          %v1272 = vmax.f32 %v1256, 0.0
          %v1273 = vmax.f32 %v1257, 0.0
          %v1274 = vmax.f32 %v1258, 0.0
          %v1275 = vmax.f32 %v1259, 0.0
          %v1276 = vmax.f32 %v1260, 0.0
          %v1277 = vmax.f32 %v1261, 0.0
          %v1278 = vmax.f32 %v1262, 0.0
          %v1279 = vmax.f32 %v1263, 0.0
          %1280 = vst [vmem:[%s436] sm:$0xff] %v1264
          %1281 = vst [vmem:[%s436 + $0x8] sm:$0xff] %v1265
          %1282 = vst [vmem:[%s436 + $0x10] sm:$0xff] %v1266
          %1283 = vst [vmem:[%s436 + $0x18] sm:$0xff] %v1267
          %1284 = vst [vmem:[%s436 + $0x20] sm:$0xff] %v1268
          %1285 = vst [vmem:[%s436 + $0x28] sm:$0xff] %v1269
          %1286 = vst [vmem:[%s436 + $0x30] sm:$0xff] %v1270
          %1287 = vst [vmem:[%s436 + $0x38] sm:$0xff] %v1271
          %1288 = vst [vmem:[%s436 + $0x40] sm:$0xff] %v1272
          %1289 = vst [vmem:[%s436 + $0x48] sm:$0xff] %v1273
          %1290 = vst [vmem:[%s436 + $0x50] sm:$0xff] %v1274
          %1291 = vst [vmem:[%s436 + $0x58] sm:$0xff] %v1275
          %1292 = vst [vmem:[%s436 + $0x60] sm:$0xff] %v1276
          %1293 = vst [vmem:[%s436 + $0x68] sm:$0xff] %v1277
          %1294 = vst [vmem:[%s436 + $0x70] sm:$0xff] %v1278
          %1295 = vst [vmem:[%s436 + $0x78] sm:$0xff] %v1279
        $region93: #{edge_graph_sage_forward.3} parent=80 // pred_fallthru
          _
        %s1296 = smul.u32 16, %s21
        %p1297 = scmp.lt.s32.totalorder %s1296, 47
        %s1298 = scalar_select %p1297, %s1296, 47
        %s1299 = smul.addr %s1298, 8
        %s1300 = scalar_lea.vmem %s6, %s1299
        // Predicated region
        $region94: #{edge_graph_sage_forward.3} parent=80 // pred_check
          %p1301 = pneg %p195
        $region95: #{edge_graph_sage_forward.3} parent=80 // pred_check_branch
          %1303 = sbr.rel (%p1301) target = $region97
        $region96: #{edge_graph_sage_forward.3} parent=80 // pred_region
          %s1304 = smul.u32 16, %s21
        $region97: #{edge_graph_sage_forward.3} parent=80 // pred_fallthru
          _
      $region81: #{edge_graph_sage_forward.3} parent=5 // pred_fallthru
        _
      %p1305 = scmp.le.s32.totalorder 2, %s12
      // Predicated region
      $region98: #{edge_graph_sage_forward.3} parent=5 // pred_check
        %p1306 = pneg %p1305
      $region99: #{edge_graph_sage_forward.3} parent=5 // pred_check_branch
        %1308 = sbr.rel (%p1306) target = $region101
      $region100: #{edge_graph_sage_forward.3} parent=5 // pred_region
        %s1309 = ssub.s32 %s12, 2
        // Predicated region
        $region102: #{edge_graph_sage_forward.3} parent=100 // pred_check
          %p1310 = pneg %p201
        $region103: #{edge_graph_sage_forward.3} parent=100 // pred_check_branch
          %1312 = sbr.rel (%p1310) target = $region105
        $region104: #{edge_graph_sage_forward.3} parent=100 // pred_region
          %s1313 = smul.u32 16, %s23
          %p1314 = scmp.lt.s32.totalorder %s1313, 47
          %s1315 = scalar_select %p1314, %s1313, 47
          %s1316 = smul.addr %s1315, 8
          %s1317 = scalar_lea.vmem %s6, %s1316
        $region105: #{edge_graph_sage_forward.3} parent=100 // pred_fallthru
          _
      $region101: #{edge_graph_sage_forward.3} parent=5 // pred_fallthru
        _
    $region6: #{edge_graph_sage_forward.3} parent=1 // loop_footer
      %s16 = sadd.s32 1, %s12
    $region7: #{edge_graph_sage_forward.3} parent=1 // loop_footer_branch
      %11 = sbr.rel target = $region3
    $region8: #{edge_graph_sage_forward.3} parent=1 // loop_exit
      _

// kernel: edge_graph_sage_forward.2
$region0: #{edge_graph_sage_forward.2}
  #allocation0 [shape = 'u32[]', space=smem, size = 0x4, offset = 0x4, fixed_abs, tag = 'smem constant byte address 0x4 - core index']
  #allocation1 [shape = 'u32[144,128]{1,0:T(1,128)}', space=vmem, size = 0x12000, scoped, tag = 'internal scratch']
  #allocation2 [shape = 'f32[128,128]{1,0:T(8,128)}', space=vmem, size = 0x10000, scoped, tag = 'scratch operand']
  #allocation3 [shape = 'bf16[128,256]{1,0:T(16,128)(2,1)}', space=vmem, size = 0x10000, scoped, tag = 'scratch operand']
  %s0 = inlined_call_operand.vmem [shape: bf16[384,384], index: 0, kind: input, shape index: {}]
  %s1 = inlined_call_operand.vmem [shape: bf16[384,128], index: 1, kind: input, shape index: {}, may-alias: {1,2}]
  %s2 = inlined_call_operand.vmem [shape: bf16[384,128], index: 2, kind: input, shape index: {}, may-alias: {1,2}]
  %s3 = inlined_call_operand.vmem [shape: f32[384,1], index: 3, kind: input, shape index: {}]
  %s4 = inlined_call_operand.vmem [shape: bf16[256,128], index: 4, kind: input, shape index: {}]
  %s5 = inlined_call_operand.vmem [shape: f32[1,128], index: 5, kind: input, shape index: {}]
  %s6 = inlined_call_operand.vmem [shape: bf16[384,128], index: 6, kind: output, shape index: {}]
  %s7 = sld [smem:[#allocation0]]
  $region106: #{edge_graph_sage_forward.2} parent=0
    _
  %s9 = ssub.s32 1, %s7
  %s10 = scalar_select 0, %s9, %s7
  $region1: #{edge_graph_sage_forward.2} parent=0
    #allocation4 [shape = 'u8[65536]{0}', space=vmem, size = 0x10000, scoped, tag = 'input window, operand 0']
    loop: start=0, step=1, limit=11
    $region2: #{edge_graph_sage_forward.2} parent=1 // loop_pre_header
      _
    $region3: #{edge_graph_sage_forward.2} parent=1 // loop_header
      %s12 = sphi 0, %s16
      %p13 = scmp.ge.s32.totalorder %s12, 11
      %s19 = sphi 0, %s31
      %s20 = sphi 0, %s27
      %s21 = sphi 0, %s19
      %s22 = sphi 0, %s20
      %s23 = sphi 0, %s21
      %s24 = sphi 0, %s22
      %s36 = sphi 0, %s38
      %s39 = sphi 0, %s36
      %s40 = sphi 0, %s39
      %s56 = sphi 0, %s40
      %s62 = sphi 0, %s64
      %s65 = sphi 0, %s62
      %s66 = sphi 0, %s65
      %s82 = sphi 0, %s66
      %s88 = sphi 0, %s90
      %s91 = sphi 0, %s88
      %s92 = sphi 0, %s91
      %s108 = sphi 0, %s92
      %s114 = sphi 0, %s116
      %s117 = sphi 0, %s114
      %s118 = sphi 0, %s117
      %s134 = sphi 0, %s118
      %s138 = sphi 0, %s138
      %s140 = sphi 0, %s138
      %s141 = sphi 0, %s140
      %s155 = sphi 0, %s141
      %s159 = sphi 0, %s159
      %s161 = sphi 0, %s159
      %s162 = sphi 0, %s161
      %s176 = sphi 0, %s162
      %s182 = sphi 0, %s184
      %s185 = sphi 0, %s182
      %s186 = sphi 0, %s185
      %s202 = sphi 0, %s186
    $region4: #{edge_graph_sage_forward.2} parent=1 // loop_header_branch
      %15 = sbr.rel (%p13) target = $region8
    $region5: #{edge_graph_sage_forward.2} parent=1 // loop_body
      %s17 = ssub.s32 %s12, 1
      %s18 = ssub.s32 %s12, 2
      %s25 = sadd.s32 1, %s20
      %p26 = scmp.ge.s32.totalorder %s25, 3
      %s27 = scalar_select %p26, 0, %s25
      %s28 = sadd.s32 1, %s19
      %s29 = scalar_select %p26, %s28, %s19
      %p30 = scmp.ge.s32.totalorder %s29, 3
      %s31 = scalar_select %p30, 0, %s29
      %s32 = ssub.s32 %s19, %s31
      %s33 = ssub.s32 %s20, %s27
      %s34 = sor.u32 %s32, %s33
      %p35 = scmp.eq.s32.totalorder %s34, 0
      %s37 = sadd.s32 %s36, 1
      %s38 = scalar_select %p35, %s36, %s37
      %p41 = pneg %p35
      %p42 = scmp.eq.s32.totalorder %s12, 8
      %p43 = por %p41, %p42
      %p44 = scmp.ne.s32.totalorder %s36, %s39
      %p45 = scmp.eq.s32.totalorder %s12, 0
      %p46 = por %p44, %p45
      %p47 = scmp.ne.s32.totalorder %s36, %s39
      %p48 = scmp.eq.s32.totalorder %s17, 8
      %p49 = por %p47, %p48
      %p50 = scmp.ne.s32.totalorder %s39, %s40
      %p51 = scmp.eq.s32.totalorder %s17, 0
      %p52 = por %p50, %p51
      %p53 = scmp.ne.s32.totalorder %s39, %s40
      %p54 = scmp.eq.s32.totalorder %s18, 8
      %p55 = por %p53, %p54
      %p57 = scmp.ne.s32.totalorder %s40, %s56
      %p58 = scmp.eq.s32.totalorder %s18, 0
      %p59 = por %p57, %p58
      %s60 = ssub.s32 %s20, %s27
      %p61 = scmp.eq.s32.totalorder %s60, 0
      %s63 = sadd.s32 %s62, 1
      %s64 = scalar_select %p61, %s62, %s63
      %p67 = pneg %p61
      %p68 = scmp.eq.s32.totalorder %s12, 8
      %p69 = por %p67, %p68
      %p70 = scmp.ne.s32.totalorder %s62, %s65
      %p71 = scmp.eq.s32.totalorder %s12, 0
      %p72 = por %p70, %p71
      %p73 = scmp.ne.s32.totalorder %s62, %s65
      %p74 = scmp.eq.s32.totalorder %s17, 8
      %p75 = por %p73, %p74
      %p76 = scmp.ne.s32.totalorder %s65, %s66
      %p77 = scmp.eq.s32.totalorder %s17, 0
      %p78 = por %p76, %p77
      %p79 = scmp.ne.s32.totalorder %s65, %s66
      %p80 = scmp.eq.s32.totalorder %s18, 8
      %p81 = por %p79, %p80
      %p83 = scmp.ne.s32.totalorder %s66, %s82
      %p84 = scmp.eq.s32.totalorder %s18, 0
      %p85 = por %p83, %p84
      %s86 = ssub.s32 %s19, %s31
      %p87 = scmp.eq.s32.totalorder %s86, 0
      %s89 = sadd.s32 %s88, 1
      %s90 = scalar_select %p87, %s88, %s89
      %p93 = pneg %p87
      %p94 = scmp.eq.s32.totalorder %s12, 8
      %p95 = por %p93, %p94
      %p96 = scmp.ne.s32.totalorder %s88, %s91
      %p97 = scmp.eq.s32.totalorder %s12, 0
      %p98 = por %p96, %p97
      %p99 = scmp.ne.s32.totalorder %s88, %s91
      %p100 = scmp.eq.s32.totalorder %s17, 8
      %p101 = por %p99, %p100
      %p102 = scmp.ne.s32.totalorder %s91, %s92
      %p103 = scmp.eq.s32.totalorder %s17, 0
      %p104 = por %p102, %p103
      %p105 = scmp.ne.s32.totalorder %s91, %s92
      %p106 = scmp.eq.s32.totalorder %s18, 8
      %p107 = por %p105, %p106
      %p109 = scmp.ne.s32.totalorder %s92, %s108
      %p110 = scmp.eq.s32.totalorder %s18, 0
      %p111 = por %p109, %p110
      %s112 = ssub.s32 %s19, %s31
      %p113 = scmp.eq.s32.totalorder %s112, 0
      %s115 = sadd.s32 %s114, 1
      %s116 = scalar_select %p113, %s114, %s115
      %p119 = pneg %p113
      %p120 = scmp.eq.s32.totalorder %s12, 8
      %p121 = por %p119, %p120
      %p122 = scmp.ne.s32.totalorder %s114, %s117
      %p123 = scmp.eq.s32.totalorder %s12, 0
      %p124 = por %p122, %p123
      %p125 = scmp.ne.s32.totalorder %s114, %s117
      %p126 = scmp.eq.s32.totalorder %s17, 8
      %p127 = por %p125, %p126
      %p128 = scmp.ne.s32.totalorder %s117, %s118
      %p129 = scmp.eq.s32.totalorder %s17, 0
      %p130 = por %p128, %p129
      %p131 = scmp.ne.s32.totalorder %s117, %s118
      %p132 = scmp.eq.s32.totalorder %s18, 8
      %p133 = por %p131, %p132
      %p135 = scmp.ne.s32.totalorder %s118, %s134
      %p136 = scmp.eq.s32.totalorder %s18, 0
      %p137 = por %p135, %p136
      %s139 = sadd.s32 %s138, 1
      %p142 = scmp.eq.s32.totalorder %s12, 8
      %p143 = scmp.ne.s32.totalorder %s138, %s140
      %p144 = scmp.eq.s32.totalorder %s12, 0
      %p145 = por %p143, %p144
      %p146 = scmp.ne.s32.totalorder %s138, %s140
      %p147 = scmp.eq.s32.totalorder %s17, 8
      %p148 = por %p146, %p147
      %p149 = scmp.ne.s32.totalorder %s140, %s141
      %p150 = scmp.eq.s32.totalorder %s17, 0
      %p151 = por %p149, %p150
      %p152 = scmp.ne.s32.totalorder %s140, %s141
      %p153 = scmp.eq.s32.totalorder %s18, 8
      %p154 = por %p152, %p153
      %p156 = scmp.ne.s32.totalorder %s141, %s155
      %p157 = scmp.eq.s32.totalorder %s18, 0
      %p158 = por %p156, %p157
      %s160 = sadd.s32 %s159, 1
      %p163 = scmp.eq.s32.totalorder %s12, 8
      %p164 = scmp.ne.s32.totalorder %s159, %s161
      %p165 = scmp.eq.s32.totalorder %s12, 0
      %p166 = por %p164, %p165
      %p167 = scmp.ne.s32.totalorder %s159, %s161
      %p168 = scmp.eq.s32.totalorder %s17, 8
      %p169 = por %p167, %p168
      %p170 = scmp.ne.s32.totalorder %s161, %s162
      %p171 = scmp.eq.s32.totalorder %s17, 0
      %p172 = por %p170, %p171
      %p173 = scmp.ne.s32.totalorder %s161, %s162
      %p174 = scmp.eq.s32.totalorder %s18, 8
      %p175 = por %p173, %p174
      %p177 = scmp.ne.s32.totalorder %s162, %s176
      %p178 = scmp.eq.s32.totalorder %s18, 0
      %p179 = por %p177, %p178
      %s180 = ssub.s32 %s19, %s31
      %p181 = scmp.eq.s32.totalorder %s180, 0
      %s183 = sadd.s32 %s182, 1
      %s184 = scalar_select %p181, %s182, %s183
      %p187 = pneg %p181
      %p188 = scmp.eq.s32.totalorder %s12, 8
      %p189 = por %p187, %p188
      %p190 = scmp.ne.s32.totalorder %s182, %s185
      %p191 = scmp.eq.s32.totalorder %s12, 0
      %p192 = por %p190, %p191
      %p193 = scmp.ne.s32.totalorder %s182, %s185
      %p194 = scmp.eq.s32.totalorder %s17, 8
      %p195 = por %p193, %p194
      %p196 = scmp.ne.s32.totalorder %s185, %s186
      %p197 = scmp.eq.s32.totalorder %s17, 0
      %p198 = por %p196, %p197
      %p199 = scmp.ne.s32.totalorder %s185, %s186
      %p200 = scmp.eq.s32.totalorder %s18, 8
      %p201 = por %p199, %p200
      %p203 = scmp.ne.s32.totalorder %s186, %s202
      %p204 = scmp.eq.s32.totalorder %s18, 0
      %p205 = por %p203, %p204
      %p206 = scmp.le.s32.totalorder 1, %s12
      %p207 = scmp.lt.s32.totalorder %s12, 10
      %p208 = pnand %p206, %p207
      %p209 = pneg %p208
      // Predicated region
      $region9: #{edge_graph_sage_forward.2} parent=5 // pred_check
        _
      $region10: #{edge_graph_sage_forward.2} parent=5 // pred_check_branch
        %211 = sbr.rel (%p208) target = $region12
      $region11: #{edge_graph_sage_forward.2} parent=5 // pred_region
        %s212 = ssub.s32 %s12, 1
        // Predicated region
        $region13: #{edge_graph_sage_forward.2} parent=11 // pred_check
          %p213 = pneg %p151
        $region14: #{edge_graph_sage_forward.2} parent=11 // pred_check_branch
          %215 = sbr.rel (%p213) target = $region16
        $region15: #{edge_graph_sage_forward.2} parent=11 // pred_region
          _
        $region16: #{edge_graph_sage_forward.2} parent=11 // pred_fallthru
          _
        // Predicated region
        $region17: #{edge_graph_sage_forward.2} parent=11 // pred_check
          %p216 = pneg %p172
        $region18: #{edge_graph_sage_forward.2} parent=11 // pred_check_branch
          %218 = sbr.rel (%p216) target = $region20
        $region19: #{edge_graph_sage_forward.2} parent=11 // pred_region
          _
        $region20: #{edge_graph_sage_forward.2} parent=11 // pred_fallthru
          _
      $region12: #{edge_graph_sage_forward.2} parent=5 // pred_fallthru
        _
      %p219 = scmp.lt.s32.totalorder %s12, 9
      // Predicated region
      $region21: #{edge_graph_sage_forward.2} parent=5 // pred_check
        %p220 = pneg %p219
      $region22: #{edge_graph_sage_forward.2} parent=5 // pred_check_branch
        %222 = sbr.rel (%p220) target = $region24
      $region23: #{edge_graph_sage_forward.2} parent=5 // pred_region
        // Predicated region
        $region25: #{edge_graph_sage_forward.2} parent=23 // pred_check
          %p223 = pneg %p46
        $region26: #{edge_graph_sage_forward.2} parent=23 // pred_check_branch
          %225 = sbr.rel (%p223) target = $region28
        $region27: #{edge_graph_sage_forward.2} parent=23 // pred_region
          %s226 = sand.u32 %s36, 1
          %s227 = sand.u32 %s36, 1
          %s228 = smul.addr %s227, 64
          %s229 = scalar_lea.vmem [#allocation4], %s228
          %s230 = smul.u32 16, %s19
          %s231 = smul.addr %s230, 3
          %s232 = sadd.s32 %s20, %s231
          %s233 = smul.addr %s232, 4
          %s234 = scalar_lea.vmem %s0, %s233
          // Predicated region
          $region29: #{edge_graph_sage_forward.2} parent=27 // pred_check
            _
          $region30: #{edge_graph_sage_forward.2} parent=27 // pred_check_branch
            %236 = sbr.rel (0) target = $region32
          $region31: #{edge_graph_sage_forward.2} parent=27 // pred_region
            // Predicated region
            $region33: #{edge_graph_sage_forward.2} parent=31 // pred_check
              _
            $region34: #{edge_graph_sage_forward.2} parent=31 // pred_check_branch
              %238 = sbr.rel target = $region36
            $region35: #{edge_graph_sage_forward.2} parent=31 // pred_region
              // Predicated region
              $region48: #{edge_graph_sage_forward.2} parent=35 // pred_check
                _
              $region49: #{edge_graph_sage_forward.2} parent=35 // pred_check_branch
                %283 = sbr.rel (0) target = $region51
              $region50: #{edge_graph_sage_forward.2} parent=35 // pred_region
                loop: start=0, step=1, limit=1
                $region52: #{edge_graph_sage_forward.2} parent=50 // loop_pre_header
                  _
                $region53: #{edge_graph_sage_forward.2} parent=50 // loop_header
                  %s285 = sphi 0, %s289
                  %p286 = scmp.ge.s32.totalorder %s285, 1
                  %s290 = sphi %s234, %s234
                  %s291 = sphi %s229, %s229
                $region54: #{edge_graph_sage_forward.2} parent=50 // loop_header_branch
                  %288 = sbr.rel (%p286) target = $region58
                $region55: #{edge_graph_sage_forward.2} parent=50 // loop_body
                  _
                $region56: #{edge_graph_sage_forward.2} parent=50 // loop_footer
                  %s289 = sadd.s32 1, %s285
                $region57: #{edge_graph_sage_forward.2} parent=50 // loop_footer_branch
                  %284 = sbr.rel target = $region53
                $region58: #{edge_graph_sage_forward.2} parent=50 // loop_exit
                  _
                loop: start=0, step=1, limit=1
                $region59: #{edge_graph_sage_forward.2} parent=50 // loop_pre_header
                  _
                $region60: #{edge_graph_sage_forward.2} parent=50 // loop_header
                  %s294 = sphi 0, %s298
                  %p295 = scmp.ge.s32.totalorder %s294, 1
                  %s299 = sphi %s234, %s234
                  %s300 = sphi %s229, %s229
                $region61: #{edge_graph_sage_forward.2} parent=50 // loop_header_branch
                  %297 = sbr.rel (%p295) target = $region65
                $region62: #{edge_graph_sage_forward.2} parent=50 // loop_body
                  %v301 = vld [vmem:[%s299] sm:$0xf]
                  %302 = vst [vmem:[%s300] sm:$0xf] %v301
                  %v303 = vld [vmem:[%s299 + $0xc] sm:$0xf]
                  %304 = vst [vmem:[%s300 + $0x4] sm:$0xf] %v303
                  %v305 = vld [vmem:[%s299 + $0x18] sm:$0xf]
                  %306 = vst [vmem:[%s300 + $0x8] sm:$0xf] %v305
                  %v307 = vld [vmem:[%s299 + $0x24] sm:$0xf]
                  %308 = vst [vmem:[%s300 + $0xc] sm:$0xf] %v307
                  %v309 = vld [vmem:[%s299 + $0x30] sm:$0xf]
                  %310 = vst [vmem:[%s300 + $0x10] sm:$0xf] %v309
                  %v311 = vld [vmem:[%s299 + $0x3c] sm:$0xf]
                  %312 = vst [vmem:[%s300 + $0x14] sm:$0xf] %v311
                  %v313 = vld [vmem:[%s299 + $0x48] sm:$0xf]
                  %314 = vst [vmem:[%s300 + $0x18] sm:$0xf] %v313
                  %v315 = vld [vmem:[%s299 + $0x54] sm:$0xf]
                  %316 = vst [vmem:[%s300 + $0x1c] sm:$0xf] %v315
                  %v317 = vld [vmem:[%s299 + $0x60] sm:$0xf]
                  %318 = vst [vmem:[%s300 + $0x20] sm:$0xf] %v317
                  %v319 = vld [vmem:[%s299 + $0x6c] sm:$0xf]
                  %320 = vst [vmem:[%s300 + $0x24] sm:$0xf] %v319
                  %v321 = vld [vmem:[%s299 + $0x78] sm:$0xf]
                  %322 = vst [vmem:[%s300 + $0x28] sm:$0xf] %v321
                  %v323 = vld [vmem:[%s299 + $0x84] sm:$0xf]
                  %324 = vst [vmem:[%s300 + $0x2c] sm:$0xf] %v323
                  %v325 = vld [vmem:[%s299 + $0x90] sm:$0xf]
                  %326 = vst [vmem:[%s300 + $0x30] sm:$0xf] %v325
                  %v327 = vld [vmem:[%s299 + $0x9c] sm:$0xf]
                  %328 = vst [vmem:[%s300 + $0x34] sm:$0xf] %v327
                  %v329 = vld [vmem:[%s299 + $0xa8] sm:$0xf]
                  %330 = vst [vmem:[%s300 + $0x38] sm:$0xf] %v329
                  %v331 = vld [vmem:[%s299 + $0xb4] sm:$0xf]
                  %332 = vst [vmem:[%s300 + $0x3c] sm:$0xf] %v331
                $region63: #{edge_graph_sage_forward.2} parent=50 // loop_footer
                  %s298 = sadd.s32 1, %s294
                $region64: #{edge_graph_sage_forward.2} parent=50 // loop_footer_branch
                  %293 = sbr.rel target = $region60
                $region65: #{edge_graph_sage_forward.2} parent=50 // loop_exit
                  _
              $region51: #{edge_graph_sage_forward.2} parent=35 // pred_fallthru
                _
            $region36: #{edge_graph_sage_forward.2} parent=31 // pred_fallthru
              _
            // Predicated region
            $region37: #{edge_graph_sage_forward.2} parent=31 // pred_check
              _
            $region38: #{edge_graph_sage_forward.2} parent=31 // pred_check_branch
              %240 = sbr.rel (0) target = $region40
            $region39: #{edge_graph_sage_forward.2} parent=31 // pred_region
              loop: start=0, step=1, limit=1
              $region41: #{edge_graph_sage_forward.2} parent=39 // loop_pre_header
                _
              $region42: #{edge_graph_sage_forward.2} parent=39 // loop_header
                %s243 = sphi 0, %s247
                %p244 = scmp.ge.s32.totalorder %s243, 1
                %s248 = sphi %s234, %s234
                %s249 = sphi %s229, %s229
              $region43: #{edge_graph_sage_forward.2} parent=39 // loop_header_branch
                %246 = sbr.rel (%p244) target = $region47
              $region44: #{edge_graph_sage_forward.2} parent=39 // loop_body
                %v250 = vld [vmem:[%s248] sm:$0xf]
                %251 = vst [vmem:[%s249] sm:$0xf] %v250
                %v252 = vld [vmem:[%s248 + $0xc] sm:$0xf]
                %253 = vst [vmem:[%s249 + $0x4] sm:$0xf] %v252
                %v254 = vld [vmem:[%s248 + $0x18] sm:$0xf]
                %255 = vst [vmem:[%s249 + $0x8] sm:$0xf] %v254
                %v256 = vld [vmem:[%s248 + $0x24] sm:$0xf]
                %257 = vst [vmem:[%s249 + $0xc] sm:$0xf] %v256
                %v258 = vld [vmem:[%s248 + $0x30] sm:$0xf]
                %259 = vst [vmem:[%s249 + $0x10] sm:$0xf] %v258
                %v260 = vld [vmem:[%s248 + $0x3c] sm:$0xf]
                %261 = vst [vmem:[%s249 + $0x14] sm:$0xf] %v260
                %v262 = vld [vmem:[%s248 + $0x48] sm:$0xf]
                %263 = vst [vmem:[%s249 + $0x18] sm:$0xf] %v262
                %v264 = vld [vmem:[%s248 + $0x54] sm:$0xf]
                %265 = vst [vmem:[%s249 + $0x1c] sm:$0xf] %v264
                %v266 = vld [vmem:[%s248 + $0x60] sm:$0xf]
                %267 = vst [vmem:[%s249 + $0x20] sm:$0xf] %v266
                %v268 = vld [vmem:[%s248 + $0x6c] sm:$0xf]
                %269 = vst [vmem:[%s249 + $0x24] sm:$0xf] %v268
                %v270 = vld [vmem:[%s248 + $0x78] sm:$0xf]
                %271 = vst [vmem:[%s249 + $0x28] sm:$0xf] %v270
                %v272 = vld [vmem:[%s248 + $0x84] sm:$0xf]
                %273 = vst [vmem:[%s249 + $0x2c] sm:$0xf] %v272
                %v274 = vld [vmem:[%s248 + $0x90] sm:$0xf]
                %275 = vst [vmem:[%s249 + $0x30] sm:$0xf] %v274
                %v276 = vld [vmem:[%s248 + $0x9c] sm:$0xf]
                %277 = vst [vmem:[%s249 + $0x34] sm:$0xf] %v276
                %v278 = vld [vmem:[%s248 + $0xa8] sm:$0xf]
                %279 = vst [vmem:[%s249 + $0x38] sm:$0xf] %v278
                %v280 = vld [vmem:[%s248 + $0xb4] sm:$0xf]
                %281 = vst [vmem:[%s249 + $0x3c] sm:$0xf] %v280
              $region45: #{edge_graph_sage_forward.2} parent=39 // loop_footer
                %s247 = sadd.s32 1, %s243
              $region46: #{edge_graph_sage_forward.2} parent=39 // loop_footer_branch
                %242 = sbr.rel target = $region42
              $region47: #{edge_graph_sage_forward.2} parent=39 // loop_exit
                _
            $region40: #{edge_graph_sage_forward.2} parent=31 // pred_fallthru
              _
          $region32: #{edge_graph_sage_forward.2} parent=27 // pred_fallthru
            _
          %333 = vnop
        $region28: #{edge_graph_sage_forward.2} parent=23 // pred_fallthru
          _
        // Predicated region
        $region66: #{edge_graph_sage_forward.2} parent=23 // pred_check
          %p334 = pneg %p72
        $region67: #{edge_graph_sage_forward.2} parent=23 // pred_check_branch
          %336 = sbr.rel (%p334) target = $region69
        $region68: #{edge_graph_sage_forward.2} parent=23 // pred_region
          %s337 = smul.u32 16, %s20
          %p338 = scmp.lt.s32.totalorder %s337, 47
          %s339 = scalar_select %p338, %s337, 47
          %s340 = smul.addr %s339, 4
          %s341 = scalar_lea.vmem %s1, %s340
          %s342 = smul.u32 16, %s20
        $region69: #{edge_graph_sage_forward.2} parent=23 // pred_fallthru
          _
        // Predicated region
        $region70: #{edge_graph_sage_forward.2} parent=23 // pred_check
          %p343 = pneg %p98
        $region71: #{edge_graph_sage_forward.2} parent=23 // pred_check_branch
          %345 = sbr.rel (%p343) target = $region73
        $region72: #{edge_graph_sage_forward.2} parent=23 // pred_region
          %s346 = smul.u32 16, %s19
          %p347 = scmp.lt.s32.totalorder %s346, 47
          %s348 = scalar_select %p347, %s346, 47
          %s349 = smul.addr %s348, 4
          %s350 = scalar_lea.vmem %s2, %s349
          %s351 = smul.u32 16, %s19
        $region73: #{edge_graph_sage_forward.2} parent=23 // pred_fallthru
          _
        // Predicated region
        $region74: #{edge_graph_sage_forward.2} parent=23 // pred_check
          %p352 = pneg %p124
        $region75: #{edge_graph_sage_forward.2} parent=23 // pred_check_branch
          %354 = sbr.rel (%p352) target = $region77
        $region76: #{edge_graph_sage_forward.2} parent=23 // pred_region
          %s355 = smul.u32 16, %s19
          %p356 = scmp.lt.s32.totalorder %s355, 47
          %s357 = scalar_select %p356, %s355, 47
          %s358 = smul.addr %s357, 8
          %s359 = scalar_lea.vmem %s3, %s358
          %s360 = smul.u32 16, %s19
        $region77: #{edge_graph_sage_forward.2} parent=23 // pred_fallthru
          _
      $region24: #{edge_graph_sage_forward.2} parent=5 // pred_fallthru
        _
      %p361 = scmp.le.s32.totalorder 1, %s12
      %p362 = scmp.lt.s32.totalorder %s12, 10
      %p363 = pnand %p361, %p362
      %p364 = pneg %p363
      // Predicated region
      $region78: #{edge_graph_sage_forward.2} parent=5 // pred_check
        _
      $region79: #{edge_graph_sage_forward.2} parent=5 // pred_check_branch
        %366 = sbr.rel (%p363) target = $region81
      $region80: #{edge_graph_sage_forward.2} parent=5 // pred_region
        %s367 = ssub.s32 %s12, 1
        %s368 = sand.u32 %s39, 1
        %s369 = sand.u32 %s39, 1
        %s370 = smul.addr %s369, 64
        %s371 = scalar_lea.vmem [#allocation4], %s370
        // Predicated region
        $region82: #{edge_graph_sage_forward.2} parent=80 // pred_check
          %p372 = pneg %p52
        $region83: #{edge_graph_sage_forward.2} parent=80 // pred_check_branch
          %374 = sbr.rel (%p372) target = $region85
        $region84: #{edge_graph_sage_forward.2} parent=80 // pred_region
          _
        $region85: #{edge_graph_sage_forward.2} parent=80 // pred_fallthru
          _
        %s375 = sand.u32 %s39, 1
        %s376 = sand.u32 %s39, 1
        %s377 = smul.addr %s376, 64
        %s378 = scalar_lea.vmem [#allocation4], %s377
        %p379 = pneg %p52
        %p380 = pneg %p49
        %s381 = smul.u32 16, %s22
        %p382 = scmp.lt.s32.totalorder %s381, 47
        %s383 = scalar_select %p382, %s381, 47
        %s384 = smul.addr %s383, 4
        %s385 = scalar_lea.vmem %s1, %s384
        %p386 = pneg %p78
        %p387 = pneg %p75
        %s388 = smul.u32 16, %s21
        %p389 = scmp.lt.s32.totalorder %s388, 47
        %s390 = scalar_select %p389, %s388, 47
        %s391 = smul.addr %s390, 4
        %s392 = scalar_lea.vmem %s2, %s391
        %p393 = pneg %p104
        %p394 = pneg %p101
        %s395 = smul.u32 16, %s21
        %p396 = scmp.lt.s32.totalorder %s395, 47
        %s397 = scalar_select %p396, %s395, 47
        %s398 = smul.addr %s397, 8
        %s399 = scalar_lea.vmem %s3, %s398
        %p400 = pneg %p130
        %p401 = pneg %p127
        %p402 = pneg %p151
        %p403 = pneg %p148
        %p404 = pneg %p172
        %p405 = pneg %p169
        %p406 = pneg %p198
        %p407 = pneg %p195
        %s408 = smul.u32 16, %s21
        %p409 = scmp.lt.s32.totalorder %s408, 47
        %s410 = scalar_select %p409, %s408, 47
        %s411 = smul.addr %s410, 4
        %s412 = scalar_lea.vmem %s6, %s411
        %s413 = smul.u32 16, %s21
        %s414 = smul.u32 16, %s22
        %p415 = scmp.lt.s32.totalorder %s414, 47
        %s416 = scalar_select %p415, %s414, 47
        %s417 = smul.addr %s416, 4
        %s418 = scalar_lea.vmem %s1, %s417
        %s419 = smul.u32 16, %s22
        %s420 = smul.u32 16, %s21
        %p421 = scmp.lt.s32.totalorder %s420, 47
        %s422 = scalar_select %p421, %s420, 47
        %s423 = smul.addr %s422, 4
        %s424 = scalar_lea.vmem %s2, %s423
        %s425 = smul.u32 16, %s21
        %s426 = smul.u32 16, %s21
        %p427 = scmp.lt.s32.totalorder %s426, 47
        %s428 = scalar_select %p427, %s426, 47
        %s429 = smul.addr %s428, 8
        %s430 = scalar_lea.vmem %s3, %s429
        %s431 = smul.u32 16, %s21
        %s432 = smul.u32 16, %s21
        %p433 = scmp.lt.s32.totalorder %s432, 47
        %s434 = scalar_select %p433, %s432, 47
        %s435 = smul.addr %s434, 4
        %s436 = scalar_lea.vmem %s6, %s435
        %s437 = smul.u32 16, %s21
        %p439 = scmp.eq.s32.totalorder %s22, 0
        // Predicated region
        $region86: #{edge_graph_sage_forward.2} parent=80 // pred_check
          %p440 = pneg %p439
        $region87: #{edge_graph_sage_forward.2} parent=80 // pred_check_branch
          %442 = sbr.rel (%p440) target = $region89
        $region88: #{edge_graph_sage_forward.2} parent=80 // pred_region
          %443 = vst [vmem:[#allocation2] sm:$0xff] 0.0
          %444 = vst [vmem:[#allocation2 + $0x8] sm:$0xff] 0.0
          %445 = vst [vmem:[#allocation2 + $0x10] sm:$0xff] 0.0
          %446 = vst [vmem:[#allocation2 + $0x18] sm:$0xff] 0.0
          %447 = vst [vmem:[#allocation2 + $0x20] sm:$0xff] 0.0
          %448 = vst [vmem:[#allocation2 + $0x28] sm:$0xff] 0.0
          %449 = vst [vmem:[#allocation2 + $0x30] sm:$0xff] 0.0
          %450 = vst [vmem:[#allocation2 + $0x38] sm:$0xff] 0.0
          %451 = vst [vmem:[#allocation2 + $0x40] sm:$0xff] 0.0
          %452 = vst [vmem:[#allocation2 + $0x48] sm:$0xff] 0.0
          %453 = vst [vmem:[#allocation2 + $0x50] sm:$0xff] 0.0
          %454 = vst [vmem:[#allocation2 + $0x58] sm:$0xff] 0.0
          %455 = vst [vmem:[#allocation2 + $0x60] sm:$0xff] 0.0
          %456 = vst [vmem:[#allocation2 + $0x68] sm:$0xff] 0.0
          %457 = vst [vmem:[#allocation2 + $0x70] sm:$0xff] 0.0
          %458 = vst [vmem:[#allocation2 + $0x78] sm:$0xff] 0.0
        $region89: #{edge_graph_sage_forward.2} parent=80 // pred_fallthru
          _
        %v459 = vld [vmem:[#allocation2] sm:$0xff]
        %v460 = vld [vmem:[#allocation2 + $0x8] sm:$0xff]
        %v461 = vld [vmem:[#allocation2 + $0x10] sm:$0xff]
        %v462 = vld [vmem:[#allocation2 + $0x18] sm:$0xff]
        %v463 = vld [vmem:[#allocation2 + $0x20] sm:$0xff]
        %v464 = vld [vmem:[#allocation2 + $0x28] sm:$0xff]
        %v465 = vld [vmem:[#allocation2 + $0x30] sm:$0xff]
        %v466 = vld [vmem:[#allocation2 + $0x38] sm:$0xff]
        %v467 = vld [vmem:[#allocation2 + $0x40] sm:$0xff]
        %v468 = vld [vmem:[#allocation2 + $0x48] sm:$0xff]
        %v469 = vld [vmem:[#allocation2 + $0x50] sm:$0xff]
        %v470 = vld [vmem:[#allocation2 + $0x58] sm:$0xff]
        %v471 = vld [vmem:[#allocation2 + $0x60] sm:$0xff]
        %v472 = vld [vmem:[#allocation2 + $0x68] sm:$0xff]
        %v473 = vld [vmem:[#allocation2 + $0x70] sm:$0xff]
        %v474 = vld [vmem:[#allocation2 + $0x78] sm:$0xff]
        %v475 = vld [vmem:[%s371] sm:$0xf]
        %v476 = vld [vmem:[%s371 + $0x4] sm:$0xf]
        %v477 = vld [vmem:[%s371 + $0x8] sm:$0xf]
        %v478 = vld [vmem:[%s371 + $0xc] sm:$0xf]
        %v479 = vld [vmem:[%s371 + $0x10] sm:$0xf]
        %v480 = vld [vmem:[%s371 + $0x14] sm:$0xf]
        %v481 = vld [vmem:[%s371 + $0x18] sm:$0xf]
        %v482 = vld [vmem:[%s371 + $0x1c] sm:$0xf]
        %v483 = vld [vmem:[%s371 + $0x20] sm:$0xf]
        %v484 = vld [vmem:[%s371 + $0x24] sm:$0xf]
        %v485 = vld [vmem:[%s371 + $0x28] sm:$0xf]
        %v486 = vld [vmem:[%s371 + $0x2c] sm:$0xf]
        %v487 = vld [vmem:[%s371 + $0x30] sm:$0xf]
        %v488 = vld [vmem:[%s371 + $0x34] sm:$0xf]
        %v489 = vld [vmem:[%s371 + $0x38] sm:$0xf]
        %v490 = vld [vmem:[%s371 + $0x3c] sm:$0xf]
        %v491 = vld [vmem:[%s418] sm:$0xf]
        %v492 = vld [vmem:[%s418 + $0x4] sm:$0xf]
        %v493 = vld [vmem:[%s418 + $0x8] sm:$0xf]
        %v494 = vld [vmem:[%s418 + $0xc] sm:$0xf]
        %v495 = vld [vmem:[%s418 + $0x10] sm:$0xf]
        %v496 = vld [vmem:[%s418 + $0x14] sm:$0xf]
        %v497 = vld [vmem:[%s418 + $0x18] sm:$0xf]
        %v498 = vld [vmem:[%s418 + $0x1c] sm:$0xf]
        %v499 = vld [vmem:[%s418 + $0x20] sm:$0xf]
        %v500 = vld [vmem:[%s418 + $0x24] sm:$0xf]
        %v501 = vld [vmem:[%s418 + $0x28] sm:$0xf]
        %v502 = vld [vmem:[%s418 + $0x2c] sm:$0xf]
        %v503 = vld [vmem:[%s418 + $0x30] sm:$0xf]
        %v504 = vld [vmem:[%s418 + $0x34] sm:$0xf]
        %v505 = vld [vmem:[%s418 + $0x38] sm:$0xf]
        %v506 = vld [vmem:[%s418 + $0x3c] sm:$0xf]
        %v523 = vunpack.c.l.b16 %v475
        %v524 = vunpack.c.l.b16 %v476
        %v525 = vunpack.c.l.b16 %v477
        %v526 = vunpack.c.l.b16 %v478
        %v527 = vunpack.c.l.b16 %v479
        %v528 = vunpack.c.l.b16 %v480
        %v529 = vunpack.c.l.b16 %v481
        %v530 = vunpack.c.l.b16 %v482
        %v531 = vunpack.c.l.b16 %v483
        %v532 = vunpack.c.l.b16 %v484
        %v533 = vunpack.c.l.b16 %v485
        %v534 = vunpack.c.l.b16 %v486
        %v535 = vunpack.c.l.b16 %v487
        %v536 = vunpack.c.l.b16 %v488
        %v537 = vunpack.c.l.b16 %v489
        %v538 = vunpack.c.l.b16 %v490
        %v539 = vpack.c.b16 %v524, %v523
        %v540 = vpack.c.b16 %v526, %v525
        %v541 = vpack.c.b16 %v528, %v527
        %v542 = vpack.c.b16 %v530, %v529
        %v543 = vpack.c.b16 %v532, %v531
        %v544 = vpack.c.b16 %v534, %v533
        %v545 = vpack.c.b16 %v536, %v535
        %v546 = vpack.c.b16 %v538, %v537
        %v571 = vunpack.c.l.b16 %v491
        %v572 = vunpack.c.l.b16 %v492
        %v573 = vunpack.c.l.b16 %v493
        %v574 = vunpack.c.l.b16 %v494
        %v575 = vunpack.c.l.b16 %v495
        %v576 = vunpack.c.l.b16 %v496
        %v577 = vunpack.c.l.b16 %v497
        %v578 = vunpack.c.l.b16 %v498
        %v579 = vunpack.c.l.b16 %v499
        %v580 = vunpack.c.l.b16 %v500
        %v581 = vunpack.c.l.b16 %v501
        %v582 = vunpack.c.l.b16 %v502
        %v583 = vunpack.c.l.b16 %v503
        %v584 = vunpack.c.l.b16 %v504
        %v585 = vunpack.c.l.b16 %v505
        %v586 = vunpack.c.l.b16 %v506
        %v587 = vpack.c.b16 %v572, %v571
        %v588 = vpack.c.b16 %v574, %v573
        %v589 = vpack.c.b16 %v576, %v575
        %v590 = vpack.c.b16 %v578, %v577
        %v591 = vpack.c.b16 %v580, %v579
        %v592 = vpack.c.b16 %v582, %v581
        %v593 = vpack.c.b16 %v584, %v583
        %v594 = vpack.c.b16 %v586, %v585
        %603 = vmatprep.subr.bf16.mxu0 0
        %604 = vmatpush1.bf16.msra.mxu0 %v587
        %605 = vmatprep.subr.bf16.mxu0 0
        %606 = vmatpush1.bf16.msra.mxu0 %v588
        %607 = vmatprep.subr.bf16.mxu0 0
        %608 = vmatpush1.bf16.msra.mxu0 %v589
        %609 = vmatprep.subr.bf16.mxu0 0
        %610 = vmatpush1.bf16.msra.mxu0 %v590
        %611 = vmatprep.subr.bf16.mxu0 0
        %612 = vmatpush1.bf16.msra.mxu0 %v591
        %613 = vmatprep.subr.bf16.mxu0 0
        %614 = vmatpush1.bf16.msra.mxu0 %v592
        %615 = vmatprep.subr.bf16.mxu0 0
        %616 = vmatpush1.bf16.msra.mxu0 %v593
        %617 = vmatprep.subr.bf16.mxu0 0
        %618 = vmatpush1.bf16.msra.mxu0 %v594
        %619 = vmatprep.subr.bf16.mxu0 0
        %620 = vmatpush1.bf16.msra.mxu0 0
        %621 = vmatprep.subr.bf16.mxu0 0
        %622 = vmatpush1.bf16.msra.mxu0 0
        %623 = vmatprep.subr.bf16.mxu0 0
        %624 = vmatpush1.bf16.msra.mxu0 0
        %625 = vmatprep.subr.bf16.mxu0 0
        %626 = vmatpush1.bf16.msra.mxu0 0
        %627 = vmatprep.subr.bf16.mxu0 0
        %628 = vmatpush1.bf16.msra.mxu0 0
        %629 = vmatprep.subr.bf16.mxu0 0
        %630 = vmatpush1.bf16.msra.mxu0 0
        %631 = vmatprep.subr.bf16.mxu0 0
        %632 = vmatpush1.bf16.msra.mxu0 0
        %633 = vmatprep.subr.bf16.mxu0 0
        %634 = vmatpush1.bf16.msra.mxu0 0
        %635 = vmatprep.mubr.bf16.mxu0 0
        %636 = vmatmul.mubr.bf16.gmra.mrb[0].mxu0 %v539
        %v637 = vpop.f32.mrb[0].mxu0
        %v638 = vadd.f32 0.0, %v637
        %v639 = vpop.f32.mrb[0].mxu0
        %v640 = vpop.f32.mrb[0].mxu0
        %v641 = vadd.f32 0.0, %v640
        %v642 = vpop.f32.mrb[0].mxu0
        %643 = vmatprep.mubr.bf16.mxu0 0
        %644 = vmatmul.mubr.bf16.gmra.mrb[0].mxu0 %v540
        %v645 = vpop.f32.mrb[0].mxu0
        %v646 = vadd.f32 0.0, %v645
        %v647 = vpop.f32.mrb[0].mxu0
        %v648 = vpop.f32.mrb[0].mxu0
        %v649 = vadd.f32 0.0, %v648
        %v650 = vpop.f32.mrb[0].mxu0
        %651 = vmatprep.mubr.bf16.mxu0 0
        %652 = vmatmul.mubr.bf16.gmra.mrb[0].mxu0 %v541
        %v653 = vpop.f32.mrb[0].mxu0
        %v654 = vadd.f32 0.0, %v653
        %v655 = vpop.f32.mrb[0].mxu0
        %v656 = vpop.f32.mrb[0].mxu0
        %v657 = vadd.f32 0.0, %v656
        %v658 = vpop.f32.mrb[0].mxu0
        %659 = vmatprep.mubr.bf16.mxu0 0
        %660 = vmatmul.mubr.bf16.gmra.mrb[0].mxu0 %v542
        %v661 = vpop.f32.mrb[0].mxu0
        %v662 = vadd.f32 0.0, %v661
        %v663 = vpop.f32.mrb[0].mxu0
        %v664 = vpop.f32.mrb[0].mxu0
        %v665 = vadd.f32 0.0, %v664
        %v666 = vpop.f32.mrb[0].mxu0
        %667 = vmatprep.mubr.bf16.mxu0 0
        %668 = vmatmul.mubr.bf16.gmra.mrb[0].mxu0 %v543
        %v669 = vpop.f32.mrb[0].mxu0
        %v670 = vadd.f32 0.0, %v669
        %v671 = vpop.f32.mrb[0].mxu0
        %v672 = vpop.f32.mrb[0].mxu0
        %v673 = vadd.f32 0.0, %v672
        %v674 = vpop.f32.mrb[0].mxu0
        %675 = vmatprep.mubr.bf16.mxu0 0
        %676 = vmatmul.mubr.bf16.gmra.mrb[0].mxu0 %v544
        %v677 = vpop.f32.mrb[0].mxu0
        %v678 = vadd.f32 0.0, %v677
        %v679 = vpop.f32.mrb[0].mxu0
        %v680 = vpop.f32.mrb[0].mxu0
        %v681 = vadd.f32 0.0, %v680
        %v682 = vpop.f32.mrb[0].mxu0
        %683 = vmatprep.mubr.bf16.mxu0 0
        %684 = vmatmul.mubr.bf16.gmra.mrb[0].mxu0 %v545
        %v685 = vpop.f32.mrb[0].mxu0
        %v686 = vadd.f32 0.0, %v685
        %v687 = vpop.f32.mrb[0].mxu0
        %v688 = vpop.f32.mrb[0].mxu0
        %v689 = vadd.f32 0.0, %v688
        %v690 = vpop.f32.mrb[0].mxu0
        %691 = vmatprep.mubr.bf16.mxu0 0
        %692 = vmatmul.mubr.bf16.gmra.mrb[0].mxu0 %v546
        %v693 = vpop.f32.mrb[0].mxu0
        %v694 = vadd.f32 0.0, %v693
        %v695 = vpop.f32.mrb[0].mxu0
        %v696 = vpop.f32.mrb[0].mxu0
        %v697 = vadd.f32 0.0, %v696
        %v698 = vpop.f32.mrb[0].mxu0
        %699 = vdwg.mxu0
        %v700 = vadd.f32 %v459, %v638
        %v701 = vadd.f32 %v460, %v641
        %v702 = vadd.f32 %v461, %v646
        %v703 = vadd.f32 %v462, %v649
        %v704 = vadd.f32 %v463, %v654
        %v705 = vadd.f32 %v464, %v657
        %v706 = vadd.f32 %v465, %v662
        %v707 = vadd.f32 %v466, %v665
        %v708 = vadd.f32 %v467, %v670
        %v709 = vadd.f32 %v468, %v673
        %v710 = vadd.f32 %v469, %v678
        %v711 = vadd.f32 %v470, %v681
        %v712 = vadd.f32 %v471, %v686
        %v713 = vadd.f32 %v472, %v689
        %v714 = vadd.f32 %v473, %v694
        %v715 = vadd.f32 %v474, %v697
        %716 = vst [vmem:[#allocation2] sm:$0xff] %v700
        %717 = vst [vmem:[#allocation2 + $0x8] sm:$0xff] %v701
        %718 = vst [vmem:[#allocation2 + $0x10] sm:$0xff] %v702
        %719 = vst [vmem:[#allocation2 + $0x18] sm:$0xff] %v703
        %720 = vst [vmem:[#allocation2 + $0x20] sm:$0xff] %v704
        %721 = vst [vmem:[#allocation2 + $0x28] sm:$0xff] %v705
        %722 = vst [vmem:[#allocation2 + $0x30] sm:$0xff] %v706
        %723 = vst [vmem:[#allocation2 + $0x38] sm:$0xff] %v707
        %724 = vst [vmem:[#allocation2 + $0x40] sm:$0xff] %v708
        %725 = vst [vmem:[#allocation2 + $0x48] sm:$0xff] %v709
        %726 = vst [vmem:[#allocation2 + $0x50] sm:$0xff] %v710
        %727 = vst [vmem:[#allocation2 + $0x58] sm:$0xff] %v711
        %728 = vst [vmem:[#allocation2 + $0x60] sm:$0xff] %v712
        %729 = vst [vmem:[#allocation2 + $0x68] sm:$0xff] %v713
        %730 = vst [vmem:[#allocation2 + $0x70] sm:$0xff] %v714
        %731 = vst [vmem:[#allocation2 + $0x78] sm:$0xff] %v715
        %p732 = scmp.eq.s32.totalorder %s22, 2
        // Predicated region
        $region90: #{edge_graph_sage_forward.2} parent=80 // pred_check
          %p733 = pneg %p732
        $region91: #{edge_graph_sage_forward.2} parent=80 // pred_check_branch
          %735 = sbr.rel (%p733) target = $region93
        $region92: #{edge_graph_sage_forward.2} parent=80 // pred_region
          %v736 = vld [vmem:[#allocation2] sm:$0xff]
          %v737 = vld [vmem:[#allocation2 + $0x8] sm:$0xff]
          %v738 = vld [vmem:[#allocation2 + $0x10] sm:$0xff]
          %v739 = vld [vmem:[#allocation2 + $0x18] sm:$0xff]
          %v740 = vld [vmem:[#allocation2 + $0x20] sm:$0xff]
          %v741 = vld [vmem:[#allocation2 + $0x28] sm:$0xff]
          %v742 = vld [vmem:[#allocation2 + $0x30] sm:$0xff]
          %v743 = vld [vmem:[#allocation2 + $0x38] sm:$0xff]
          %v744 = vld [vmem:[#allocation2 + $0x40] sm:$0xff]
          %v745 = vld [vmem:[#allocation2 + $0x48] sm:$0xff]
          %v746 = vld [vmem:[#allocation2 + $0x50] sm:$0xff]
          %v747 = vld [vmem:[#allocation2 + $0x58] sm:$0xff]
          %v748 = vld [vmem:[#allocation2 + $0x60] sm:$0xff]
          %v749 = vld [vmem:[#allocation2 + $0x68] sm:$0xff]
          %v750 = vld [vmem:[#allocation2 + $0x70] sm:$0xff]
          %v751 = vld [vmem:[#allocation2 + $0x78] sm:$0xff]
          %v752 = vld [vmem:[%s430] sm:$0xff]
          %v753 = vld [vmem:[%s430 + $0x8] sm:$0xff]
          %v754 = vld [vmem:[%s430 + $0x10] sm:$0xff]
          %v755 = vld [vmem:[%s430 + $0x18] sm:$0xff]
          %v756 = vld [vmem:[%s430 + $0x20] sm:$0xff]
          %v757 = vld [vmem:[%s430 + $0x28] sm:$0xff]
          %v758 = vld [vmem:[%s430 + $0x30] sm:$0xff]
          %v759 = vld [vmem:[%s430 + $0x38] sm:$0xff]
          %v760 = vld [vmem:[%s430 + $0x40] sm:$0xff]
          %v761 = vld [vmem:[%s430 + $0x48] sm:$0xff]
          %v762 = vld [vmem:[%s430 + $0x50] sm:$0xff]
          %v763 = vld [vmem:[%s430 + $0x58] sm:$0xff]
          %v764 = vld [vmem:[%s430 + $0x60] sm:$0xff]
          %v765 = vld [vmem:[%s430 + $0x68] sm:$0xff]
          %v766 = vld [vmem:[%s430 + $0x70] sm:$0xff]
          %v767 = vld [vmem:[%s430 + $0x78] sm:$0xff]
          %769 = vset.pattern.permute.xlu0 0
          %770 = vperm.xlu0 %769, %v752
          %v771 = vpop.permute.xlu0 %770
          %774 = vset.pattern.permute.xlu0 0
          %775 = vperm.xlu0 %774, %v753
          %v776 = vpop.permute.xlu0 %775
          %779 = vset.pattern.permute.xlu0 0
          %780 = vperm.xlu0 %779, %v754
          %v781 = vpop.permute.xlu0 %780
          %784 = vset.pattern.permute.xlu0 0
          %785 = vperm.xlu0 %784, %v755
          %v786 = vpop.permute.xlu0 %785
          %789 = vset.pattern.permute.xlu0 0
          %790 = vperm.xlu0 %789, %v756
          %v791 = vpop.permute.xlu0 %790
          %794 = vset.pattern.permute.xlu0 0
          %795 = vperm.xlu0 %794, %v757
          %v796 = vpop.permute.xlu0 %795
          %799 = vset.pattern.permute.xlu0 0
          %800 = vperm.xlu0 %799, %v758
          %v801 = vpop.permute.xlu0 %800
          %804 = vset.pattern.permute.xlu0 0
          %805 = vperm.xlu0 %804, %v759
          %v806 = vpop.permute.xlu0 %805
          %809 = vset.pattern.permute.xlu0 0
          %810 = vperm.xlu0 %809, %v760
          %v811 = vpop.permute.xlu0 %810
          %814 = vset.pattern.permute.xlu0 0
          %815 = vperm.xlu0 %814, %v761
          %v816 = vpop.permute.xlu0 %815
          %819 = vset.pattern.permute.xlu0 0
          %820 = vperm.xlu0 %819, %v762
          %v821 = vpop.permute.xlu0 %820
          %824 = vset.pattern.permute.xlu0 0
          %825 = vperm.xlu0 %824, %v763
          %v826 = vpop.permute.xlu0 %825
          %829 = vset.pattern.permute.xlu0 0
          %830 = vperm.xlu0 %829, %v764
          %v831 = vpop.permute.xlu0 %830
          %834 = vset.pattern.permute.xlu0 0
          %835 = vperm.xlu0 %834, %v765
          %v836 = vpop.permute.xlu0 %835
          %839 = vset.pattern.permute.xlu0 0
          %840 = vperm.xlu0 %839, %v766
          %v841 = vpop.permute.xlu0 %840
          %844 = vset.pattern.permute.xlu0 0
          %845 = vperm.xlu0 %844, %v767
          %v846 = vpop.permute.xlu0 %845
          %v848 = vmul.f32 %v736, %v771
          %v849 = vmul.f32 %v737, %v776
          %v850 = vmul.f32 %v738, %v781
          %v851 = vmul.f32 %v739, %v786
          %v852 = vmul.f32 %v740, %v791
          %v853 = vmul.f32 %v741, %v796
          %v854 = vmul.f32 %v742, %v801
          %v855 = vmul.f32 %v743, %v806
          %v856 = vmul.f32 %v744, %v811
          %v857 = vmul.f32 %v745, %v816
          %v858 = vmul.f32 %v746, %v821
          %v859 = vmul.f32 %v747, %v826
          %v860 = vmul.f32 %v748, %v831
          %v861 = vmul.f32 %v749, %v836
          %v862 = vmul.f32 %v750, %v841
          %v863 = vmul.f32 %v751, %v846
          %v864 = vpack.c.bf16 %v849, %v848
          %v865 = vpack.c.bf16 %v851, %v850
          %v866 = vpack.c.bf16 %v853, %v852
          %v867 = vpack.c.bf16 %v855, %v854
          %v868 = vpack.c.bf16 %v857, %v856
          %v869 = vpack.c.bf16 %v859, %v858
          %v870 = vpack.c.bf16 %v861, %v860
          %v871 = vpack.c.bf16 %v863, %v862
          %872 = vst [vmem:[#allocation3] sm:$0xff] %v864
          %873 = vst [vmem:[#allocation3 + $0x10] sm:$0xff] %v865
          %874 = vst [vmem:[#allocation3 + $0x20] sm:$0xff] %v866
          %875 = vst [vmem:[#allocation3 + $0x30] sm:$0xff] %v867
          %876 = vst [vmem:[#allocation3 + $0x40] sm:$0xff] %v868
          %877 = vst [vmem:[#allocation3 + $0x50] sm:$0xff] %v869
          %878 = vst [vmem:[#allocation3 + $0x60] sm:$0xff] %v870
          %879 = vst [vmem:[#allocation3 + $0x70] sm:$0xff] %v871
          %v880 = vld [vmem:[%s424] sm:$0xf]
          %v881 = vld [vmem:[%s424 + $0x4] sm:$0xf]
          %v882 = vld [vmem:[%s424 + $0x8] sm:$0xf]
          %v883 = vld [vmem:[%s424 + $0xc] sm:$0xf]
          %v884 = vld [vmem:[%s424 + $0x10] sm:$0xf]
          %v885 = vld [vmem:[%s424 + $0x14] sm:$0xf]
          %v886 = vld [vmem:[%s424 + $0x18] sm:$0xf]
          %v887 = vld [vmem:[%s424 + $0x1c] sm:$0xf]
          %v888 = vld [vmem:[%s424 + $0x20] sm:$0xf]
          %v889 = vld [vmem:[%s424 + $0x24] sm:$0xf]
          %v890 = vld [vmem:[%s424 + $0x28] sm:$0xf]
          %v891 = vld [vmem:[%s424 + $0x2c] sm:$0xf]
          %v892 = vld [vmem:[%s424 + $0x30] sm:$0xf]
          %v893 = vld [vmem:[%s424 + $0x34] sm:$0xf]
          %v894 = vld [vmem:[%s424 + $0x38] sm:$0xf]
          %v895 = vld [vmem:[%s424 + $0x3c] sm:$0xf]
          %v912 = vunpack.c.l.b16 %v880
          %v913 = vunpack.c.l.b16 %v881
          %v914 = vunpack.c.l.b16 %v882
          %v915 = vunpack.c.l.b16 %v883
          %v916 = vunpack.c.l.b16 %v884
          %v917 = vunpack.c.l.b16 %v885
          %v918 = vunpack.c.l.b16 %v886
          %v919 = vunpack.c.l.b16 %v887
          %v920 = vunpack.c.l.b16 %v888
          %v921 = vunpack.c.l.b16 %v889
          %v922 = vunpack.c.l.b16 %v890
          %v923 = vunpack.c.l.b16 %v891
          %v924 = vunpack.c.l.b16 %v892
          %v925 = vunpack.c.l.b16 %v893
          %v926 = vunpack.c.l.b16 %v894
          %v927 = vunpack.c.l.b16 %v895
          %v928 = vpack.c.b16 %v913, %v912
          %v929 = vpack.c.b16 %v915, %v914
          %v930 = vpack.c.b16 %v917, %v916
          %v931 = vpack.c.b16 %v919, %v918
          %v932 = vpack.c.b16 %v921, %v920
          %v933 = vpack.c.b16 %v923, %v922
          %v934 = vpack.c.b16 %v925, %v924
          %v935 = vpack.c.b16 %v927, %v926
          %944 = vst [vmem:[#allocation3 + $0x8] sm:$0xff] %v928
          %945 = vst [vmem:[#allocation3 + $0x18] sm:$0xff] %v929
          %946 = vst [vmem:[#allocation3 + $0x28] sm:$0xff] %v930
          %947 = vst [vmem:[#allocation3 + $0x38] sm:$0xff] %v931
          %948 = vst [vmem:[#allocation3 + $0x48] sm:$0xff] %v932
          %949 = vst [vmem:[#allocation3 + $0x58] sm:$0xff] %v933
          %950 = vst [vmem:[#allocation3 + $0x68] sm:$0xff] %v934
          %951 = vst [vmem:[#allocation3 + $0x78] sm:$0xff] %v935
          %v952 = vld [vmem:[#allocation3] sm:$0xff]
          %v953 = vld [vmem:[#allocation3 + $0x8] sm:$0xff]
          %v954 = vld [vmem:[#allocation3 + $0x10] sm:$0xff]
          %v955 = vld [vmem:[#allocation3 + $0x18] sm:$0xff]
          %v956 = vld [vmem:[#allocation3 + $0x20] sm:$0xff]
          %v957 = vld [vmem:[#allocation3 + $0x28] sm:$0xff]
          %v958 = vld [vmem:[#allocation3 + $0x30] sm:$0xff]
          %v959 = vld [vmem:[#allocation3 + $0x38] sm:$0xff]
          %v960 = vld [vmem:[#allocation3 + $0x40] sm:$0xff]
          %v961 = vld [vmem:[#allocation3 + $0x48] sm:$0xff]
          %v962 = vld [vmem:[#allocation3 + $0x50] sm:$0xff]
          %v963 = vld [vmem:[#allocation3 + $0x58] sm:$0xff]
          %v964 = vld [vmem:[#allocation3 + $0x60] sm:$0xff]
          %v965 = vld [vmem:[#allocation3 + $0x68] sm:$0xff]
          %v966 = vld [vmem:[#allocation3 + $0x70] sm:$0xff]
          %v967 = vld [vmem:[#allocation3 + $0x78] sm:$0xff]
          %v968 = vld [vmem:[%s4] sm:$0xf]
          %v969 = vld [vmem:[%s4 + $0x4] sm:$0xf]
          %v970 = vld [vmem:[%s4 + $0x8] sm:$0xf]
          %v971 = vld [vmem:[%s4 + $0xc] sm:$0xf]
          %v972 = vld [vmem:[%s4 + $0x10] sm:$0xf]
          %v973 = vld [vmem:[%s4 + $0x14] sm:$0xf]
          %v974 = vld [vmem:[%s4 + $0x18] sm:$0xf]
          %v975 = vld [vmem:[%s4 + $0x1c] sm:$0xf]
          %v976 = vld [vmem:[%s4 + $0x20] sm:$0xf]
          %v977 = vld [vmem:[%s4 + $0x24] sm:$0xf]
          %v978 = vld [vmem:[%s4 + $0x28] sm:$0xf]
          %v979 = vld [vmem:[%s4 + $0x2c] sm:$0xf]
          %v980 = vld [vmem:[%s4 + $0x30] sm:$0xf]
          %v981 = vld [vmem:[%s4 + $0x34] sm:$0xf]
          %v982 = vld [vmem:[%s4 + $0x38] sm:$0xf]
          %v983 = vld [vmem:[%s4 + $0x3c] sm:$0xf]
          %v984 = vld [vmem:[%s4 + $0x40] sm:$0xf]
          %v985 = vld [vmem:[%s4 + $0x44] sm:$0xf]
          %v986 = vld [vmem:[%s4 + $0x48] sm:$0xf]
          %v987 = vld [vmem:[%s4 + $0x4c] sm:$0xf]
          %v988 = vld [vmem:[%s4 + $0x50] sm:$0xf]
          %v989 = vld [vmem:[%s4 + $0x54] sm:$0xf]
          %v990 = vld [vmem:[%s4 + $0x58] sm:$0xf]
          %v991 = vld [vmem:[%s4 + $0x5c] sm:$0xf]
          %v992 = vld [vmem:[%s4 + $0x60] sm:$0xf]
          %v993 = vld [vmem:[%s4 + $0x64] sm:$0xf]
          %v994 = vld [vmem:[%s4 + $0x68] sm:$0xf]
          %v995 = vld [vmem:[%s4 + $0x6c] sm:$0xf]
          %v996 = vld [vmem:[%s4 + $0x70] sm:$0xf]
          %v997 = vld [vmem:[%s4 + $0x74] sm:$0xf]
          %v998 = vld [vmem:[%s4 + $0x78] sm:$0xf]
          %v999 = vld [vmem:[%s4 + $0x7c] sm:$0xf]
          %v1000 = vld [vmem:[%s5] sm:$0x1]
          %v1002 = vlaneseq
          %v1003 = vshrl.u32 %v1002, 7
          %v1004 = vsub.s32 0, %v1003
          %v1005 = vrot.slane %v1000, %v1004
          %v1039 = vunpack.c.l.b16 %v968
          %v1040 = vunpack.c.l.b16 %v969
          %v1041 = vunpack.c.l.b16 %v970
          %v1042 = vunpack.c.l.b16 %v971
          %v1043 = vunpack.c.l.b16 %v972
          %v1044 = vunpack.c.l.b16 %v973
          %v1045 = vunpack.c.l.b16 %v974
          %v1046 = vunpack.c.l.b16 %v975
          %v1047 = vunpack.c.l.b16 %v976
          %v1048 = vunpack.c.l.b16 %v977
          %v1049 = vunpack.c.l.b16 %v978
          %v1050 = vunpack.c.l.b16 %v979
          %v1051 = vunpack.c.l.b16 %v980
          %v1052 = vunpack.c.l.b16 %v981
          %v1053 = vunpack.c.l.b16 %v982
          %v1054 = vunpack.c.l.b16 %v983
          %v1055 = vunpack.c.l.b16 %v984
          %v1056 = vunpack.c.l.b16 %v985
          %v1057 = vunpack.c.l.b16 %v986
          %v1058 = vunpack.c.l.b16 %v987
          %v1059 = vunpack.c.l.b16 %v988
          %v1060 = vunpack.c.l.b16 %v989
          %v1061 = vunpack.c.l.b16 %v990
          %v1062 = vunpack.c.l.b16 %v991
          %v1063 = vunpack.c.l.b16 %v992
          %v1064 = vunpack.c.l.b16 %v993
          %v1065 = vunpack.c.l.b16 %v994
          %v1066 = vunpack.c.l.b16 %v995
          %v1067 = vunpack.c.l.b16 %v996
          %v1068 = vunpack.c.l.b16 %v997
          %v1069 = vunpack.c.l.b16 %v998
          %v1070 = vunpack.c.l.b16 %v999
          %v1071 = vpack.c.b16 %v1040, %v1039
          %v1072 = vpack.c.b16 %v1042, %v1041
          %v1073 = vpack.c.b16 %v1044, %v1043
          %v1074 = vpack.c.b16 %v1046, %v1045
          %v1075 = vpack.c.b16 %v1048, %v1047
          %v1076 = vpack.c.b16 %v1050, %v1049
          %v1077 = vpack.c.b16 %v1052, %v1051
          %v1078 = vpack.c.b16 %v1054, %v1053
          %v1079 = vpack.c.b16 %v1056, %v1055
          %v1080 = vpack.c.b16 %v1058, %v1057
          %v1081 = vpack.c.b16 %v1060, %v1059
          %v1082 = vpack.c.b16 %v1062, %v1061
          %v1083 = vpack.c.b16 %v1064, %v1063
          %v1084 = vpack.c.b16 %v1066, %v1065
          %v1085 = vpack.c.b16 %v1068, %v1067
          %v1086 = vpack.c.b16 %v1070, %v1069
          %1103 = vmatprep.subr.bf16.mxu0 0
          %1104 = vmatpush1.bf16.msra.mxu0 %v1071
          %1105 = vmatprep.subr.bf16.mxu0 0
          %1106 = vmatpush1.bf16.msra.mxu0 %v1072
          %1107 = vmatprep.subr.bf16.mxu0 0
          %1108 = vmatpush1.bf16.msra.mxu0 %v1073
          %1109 = vmatprep.subr.bf16.mxu0 0
          %1110 = vmatpush1.bf16.msra.mxu0 %v1074
          %1111 = vmatprep.subr.bf16.mxu0 0
          %1112 = vmatpush1.bf16.msra.mxu0 %v1075
          %1113 = vmatprep.subr.bf16.mxu0 0
          %1114 = vmatpush1.bf16.msra.mxu0 %v1076
          %1115 = vmatprep.subr.bf16.mxu0 0
          %1116 = vmatpush1.bf16.msra.mxu0 %v1077
          %1117 = vmatprep.subr.bf16.mxu0 0
          %1118 = vmatpush1.bf16.msra.mxu0 %v1078
          %1119 = vmatprep.subr.bf16.mxu0 0
          %1120 = vmatpush1.bf16.msra.mxu0 %v1079
          %1121 = vmatprep.subr.bf16.mxu0 0
          %1122 = vmatpush1.bf16.msra.mxu0 %v1080
          %1123 = vmatprep.subr.bf16.mxu0 0
          %1124 = vmatpush1.bf16.msra.mxu0 %v1081
          %1125 = vmatprep.subr.bf16.mxu0 0
          %1126 = vmatpush1.bf16.msra.mxu0 %v1082
          %1127 = vmatprep.subr.bf16.mxu0 0
          %1128 = vmatpush1.bf16.msra.mxu0 %v1083
          %1129 = vmatprep.subr.bf16.mxu0 0
          %1130 = vmatpush1.bf16.msra.mxu0 %v1084
          %1131 = vmatprep.subr.bf16.mxu0 0
          %1132 = vmatpush1.bf16.msra.mxu0 %v1085
          %1133 = vmatprep.subr.bf16.mxu0 0
          %1134 = vmatpush1.bf16.msra.mxu0 %v1086
          %1135 = vmatprep.mubr.bf16.mxu0 %v953
          %1136 = vmatmul.mubr.bf16.gmra.mrb[0].mxu0 %v952
          %v1137 = vpop.f32.mrb[0].mxu0
          %v1138 = vadd.f32 %v1005, %v1137
          %v1139 = vpop.f32.mrb[0].mxu0
          %v1140 = vpop.f32.mrb[0].mxu0
          %v1141 = vadd.f32 %v1005, %v1140
          %v1142 = vpop.f32.mrb[0].mxu0
          %1143 = vmatprep.mubr.bf16.mxu0 %v955
          %1144 = vmatmul.mubr.bf16.gmra.mrb[0].mxu0 %v954
          %v1145 = vpop.f32.mrb[0].mxu0
          %v1146 = vadd.f32 %v1005, %v1145
          %v1147 = vpop.f32.mrb[0].mxu0
          %v1148 = vpop.f32.mrb[0].mxu0
          %v1149 = vadd.f32 %v1005, %v1148
          %v1150 = vpop.f32.mrb[0].mxu0
          %1151 = vmatprep.mubr.bf16.mxu0 %v957
          %1152 = vmatmul.mubr.bf16.gmra.mrb[0].mxu0 %v956
          %v1153 = vpop.f32.mrb[0].mxu0
          %v1154 = vadd.f32 %v1005, %v1153
          %v1155 = vpop.f32.mrb[0].mxu0
          %v1156 = vpop.f32.mrb[0].mxu0
          %v1157 = vadd.f32 %v1005, %v1156
          %v1158 = vpop.f32.mrb[0].mxu0
          %1159 = vmatprep.mubr.bf16.mxu0 %v959
          %1160 = vmatmul.mubr.bf16.gmra.mrb[0].mxu0 %v958
          %v1161 = vpop.f32.mrb[0].mxu0
          %v1162 = vadd.f32 %v1005, %v1161
          %v1163 = vpop.f32.mrb[0].mxu0
          %v1164 = vpop.f32.mrb[0].mxu0
          %v1165 = vadd.f32 %v1005, %v1164
          %v1166 = vpop.f32.mrb[0].mxu0
          %1167 = vmatprep.mubr.bf16.mxu0 %v961
          %1168 = vmatmul.mubr.bf16.gmra.mrb[0].mxu0 %v960
          %v1169 = vpop.f32.mrb[0].mxu0
          %v1170 = vadd.f32 %v1005, %v1169
          %v1171 = vpop.f32.mrb[0].mxu0
          %v1172 = vpop.f32.mrb[0].mxu0
          %v1173 = vadd.f32 %v1005, %v1172
          %v1174 = vpop.f32.mrb[0].mxu0
          %1175 = vmatprep.mubr.bf16.mxu0 %v963
          %1176 = vmatmul.mubr.bf16.gmra.mrb[0].mxu0 %v962
          %v1177 = vpop.f32.mrb[0].mxu0
          %v1178 = vadd.f32 %v1005, %v1177
          %v1179 = vpop.f32.mrb[0].mxu0
          %v1180 = vpop.f32.mrb[0].mxu0
          %v1181 = vadd.f32 %v1005, %v1180
          %v1182 = vpop.f32.mrb[0].mxu0
          %1183 = vmatprep.mubr.bf16.mxu0 %v965
          %1184 = vmatmul.mubr.bf16.gmra.mrb[0].mxu0 %v964
          %v1185 = vpop.f32.mrb[0].mxu0
          %v1186 = vadd.f32 %v1005, %v1185
          %v1187 = vpop.f32.mrb[0].mxu0
          %v1188 = vpop.f32.mrb[0].mxu0
          %v1189 = vadd.f32 %v1005, %v1188
          %v1190 = vpop.f32.mrb[0].mxu0
          %1191 = vmatprep.mubr.bf16.mxu0 %v967
          %1192 = vmatmul.mubr.bf16.gmra.mrb[0].mxu0 %v966
          %v1193 = vpop.f32.mrb[0].mxu0
          %v1194 = vadd.f32 %v1005, %v1193
          %v1195 = vpop.f32.mrb[0].mxu0
          %v1196 = vpop.f32.mrb[0].mxu0
          %v1197 = vadd.f32 %v1005, %v1196
          %v1198 = vpop.f32.mrb[0].mxu0
          %1199 = vdwg.mxu0
          %vm1200 = vcmp.ne.f32.partialorder %v1138, %v1138
          %vm1201 = vcmp.ne.f32.partialorder %v1141, %v1141
          %vm1202 = vcmp.ne.f32.partialorder %v1146, %v1146
          %vm1203 = vcmp.ne.f32.partialorder %v1149, %v1149
          %vm1204 = vcmp.ne.f32.partialorder %v1154, %v1154
          %vm1205 = vcmp.ne.f32.partialorder %v1157, %v1157
          %vm1206 = vcmp.ne.f32.partialorder %v1162, %v1162
          %vm1207 = vcmp.ne.f32.partialorder %v1165, %v1165
          %vm1208 = vcmp.ne.f32.partialorder %v1170, %v1170
          %vm1209 = vcmp.ne.f32.partialorder %v1173, %v1173
          %vm1210 = vcmp.ne.f32.partialorder %v1178, %v1178
          %vm1211 = vcmp.ne.f32.partialorder %v1181, %v1181
          %vm1212 = vcmp.ne.f32.partialorder %v1186, %v1186
          %vm1213 = vcmp.ne.f32.partialorder %v1189, %v1189
          %vm1214 = vcmp.ne.f32.partialorder %v1194, %v1194
          %vm1215 = vcmp.ne.f32.partialorder %v1197, %v1197
          %v1216 = vsel %vm1200, 0.0, %v1138
          %v1217 = vsel %vm1201, 0.0, %v1141
          %v1218 = vsel %vm1202, 0.0, %v1146
          %v1219 = vsel %vm1203, 0.0, %v1149
          %v1220 = vsel %vm1204, 0.0, %v1154
          %v1221 = vsel %vm1205, 0.0, %v1157
          %v1222 = vsel %vm1206, 0.0, %v1162
          %v1223 = vsel %vm1207, 0.0, %v1165
          %v1224 = vsel %vm1208, 0.0, %v1170
          %v1225 = vsel %vm1209, 0.0, %v1173
          %v1226 = vsel %vm1210, 0.0, %v1178
          %v1227 = vsel %vm1211, 0.0, %v1181
          %v1228 = vsel %vm1212, 0.0, %v1186
          %v1229 = vsel %vm1213, 0.0, %v1189
          %v1230 = vsel %vm1214, 0.0, %v1194
          %v1231 = vsel %vm1215, 0.0, %v1197
          %v1232 = vmax.f32 %v1216, -3.4028235e+38
          %v1233 = vmax.f32 %v1217, -3.4028235e+38
          %v1234 = vmax.f32 %v1218, -3.4028235e+38
          %v1235 = vmax.f32 %v1219, -3.4028235e+38
          %v1236 = vmax.f32 %v1220, -3.4028235e+38
          %v1237 = vmax.f32 %v1221, -3.4028235e+38
          %v1238 = vmax.f32 %v1222, -3.4028235e+38
          %v1239 = vmax.f32 %v1223, -3.4028235e+38
          %v1240 = vmax.f32 %v1224, -3.4028235e+38
          %v1241 = vmax.f32 %v1225, -3.4028235e+38
          %v1242 = vmax.f32 %v1226, -3.4028235e+38
          %v1243 = vmax.f32 %v1227, -3.4028235e+38
          %v1244 = vmax.f32 %v1228, -3.4028235e+38
          %v1245 = vmax.f32 %v1229, -3.4028235e+38
          %v1246 = vmax.f32 %v1230, -3.4028235e+38
          %v1247 = vmax.f32 %v1231, -3.4028235e+38
          %v1248 = vmin.f32 %v1232, 3.4028235e+38
          %v1249 = vmin.f32 %v1233, 3.4028235e+38
          %v1250 = vmin.f32 %v1234, 3.4028235e+38
          %v1251 = vmin.f32 %v1235, 3.4028235e+38
          %v1252 = vmin.f32 %v1236, 3.4028235e+38
          %v1253 = vmin.f32 %v1237, 3.4028235e+38
          %v1254 = vmin.f32 %v1238, 3.4028235e+38
          %v1255 = vmin.f32 %v1239, 3.4028235e+38
          %v1256 = vmin.f32 %v1240, 3.4028235e+38
          %v1257 = vmin.f32 %v1241, 3.4028235e+38
          %v1258 = vmin.f32 %v1242, 3.4028235e+38
          %v1259 = vmin.f32 %v1243, 3.4028235e+38
          %v1260 = vmin.f32 %v1244, 3.4028235e+38
          %v1261 = vmin.f32 %v1245, 3.4028235e+38
          %v1262 = vmin.f32 %v1246, 3.4028235e+38
          %v1263 = vmin.f32 %v1247, 3.4028235e+38
          %v1264 = vmax.f32 %v1248, 0.0
          %v1265 = vmax.f32 %v1249, 0.0
          %v1266 = vmax.f32 %v1250, 0.0
          %v1267 = vmax.f32 %v1251, 0.0
          %v1268 = vmax.f32 %v1252, 0.0
          %v1269 = vmax.f32 %v1253, 0.0
          %v1270 = vmax.f32 %v1254, 0.0
          %v1271 = vmax.f32 %v1255, 0.0
          %v1272 = vmax.f32 %v1256, 0.0
          %v1273 = vmax.f32 %v1257, 0.0
          %v1274 = vmax.f32 %v1258, 0.0
          %v1275 = vmax.f32 %v1259, 0.0
          %v1276 = vmax.f32 %v1260, 0.0
          %v1277 = vmax.f32 %v1261, 0.0
          %v1278 = vmax.f32 %v1262, 0.0
          %v1279 = vmax.f32 %v1263, 0.0
          %v1280 = vpack.c.bf16 %v1265, %v1264
          %v1281 = vpack.c.bf16 %v1267, %v1266
          %v1282 = vpack.c.bf16 %v1269, %v1268
          %v1283 = vpack.c.bf16 %v1271, %v1270
          %v1284 = vpack.c.bf16 %v1273, %v1272
          %v1285 = vpack.c.bf16 %v1275, %v1274
          %v1286 = vpack.c.bf16 %v1277, %v1276
          %v1287 = vpack.c.bf16 %v1279, %v1278
          %v1296 = vunpack.c.l.b16 %v1280
          %v1297 = vunpack.c.h.b16 %v1280
          %v1298 = vunpack.c.l.b16 %v1281
          %v1299 = vunpack.c.h.b16 %v1281
          %v1300 = vunpack.c.l.b16 %v1282
          %v1301 = vunpack.c.h.b16 %v1282
          %v1302 = vunpack.c.l.b16 %v1283
          %v1303 = vunpack.c.h.b16 %v1283
          %v1304 = vunpack.c.l.b16 %v1284
          %v1305 = vunpack.c.h.b16 %v1284
          %v1306 = vunpack.c.l.b16 %v1285
          %v1307 = vunpack.c.h.b16 %v1285
          %v1308 = vunpack.c.l.b16 %v1286
          %v1309 = vunpack.c.h.b16 %v1286
          %v1310 = vunpack.c.l.b16 %v1287
          %v1311 = vunpack.c.h.b16 %v1287
          %v1312 = vpack.c.b16 %v1296, %v1296
          %v1313 = vpack.c.b16 %v1297, %v1297
          %v1314 = vpack.c.b16 %v1298, %v1298
          %v1315 = vpack.c.b16 %v1299, %v1299
          %v1316 = vpack.c.b16 %v1300, %v1300
          %v1317 = vpack.c.b16 %v1301, %v1301
          %v1318 = vpack.c.b16 %v1302, %v1302
          %v1319 = vpack.c.b16 %v1303, %v1303
          %v1320 = vpack.c.b16 %v1304, %v1304
          %v1321 = vpack.c.b16 %v1305, %v1305
          %v1322 = vpack.c.b16 %v1306, %v1306
          %v1323 = vpack.c.b16 %v1307, %v1307
          %v1324 = vpack.c.b16 %v1308, %v1308
          %v1325 = vpack.c.b16 %v1309, %v1309
          %v1326 = vpack.c.b16 %v1310, %v1310
          %v1327 = vpack.c.b16 %v1311, %v1311
          %1344 = vst [vmem:[%s436] sm:$0xf] %v1312
          %1345 = vst [vmem:[%s436 + $0x4] sm:$0xf] %v1313
          %1346 = vst [vmem:[%s436 + $0x8] sm:$0xf] %v1314
          %1347 = vst [vmem:[%s436 + $0xc] sm:$0xf] %v1315
          %1348 = vst [vmem:[%s436 + $0x10] sm:$0xf] %v1316
          %1349 = vst [vmem:[%s436 + $0x14] sm:$0xf] %v1317
          %1350 = vst [vmem:[%s436 + $0x18] sm:$0xf] %v1318
          %1351 = vst [vmem:[%s436 + $0x1c] sm:$0xf] %v1319
          %1352 = vst [vmem:[%s436 + $0x20] sm:$0xf] %v1320
          %1353 = vst [vmem:[%s436 + $0x24] sm:$0xf] %v1321
          %1354 = vst [vmem:[%s436 + $0x28] sm:$0xf] %v1322
          %1355 = vst [vmem:[%s436 + $0x2c] sm:$0xf] %v1323
          %1356 = vst [vmem:[%s436 + $0x30] sm:$0xf] %v1324
          %1357 = vst [vmem:[%s436 + $0x34] sm:$0xf] %v1325
          %1358 = vst [vmem:[%s436 + $0x38] sm:$0xf] %v1326
          %1359 = vst [vmem:[%s436 + $0x3c] sm:$0xf] %v1327
        $region93: #{edge_graph_sage_forward.2} parent=80 // pred_fallthru
          _
        %s1360 = smul.u32 16, %s21
        %p1361 = scmp.lt.s32.totalorder %s1360, 47
        %s1362 = scalar_select %p1361, %s1360, 47
        %s1363 = smul.addr %s1362, 4
        %s1364 = scalar_lea.vmem %s6, %s1363
        // Predicated region
        $region94: #{edge_graph_sage_forward.2} parent=80 // pred_check
          %p1365 = pneg %p195
        $region95: #{edge_graph_sage_forward.2} parent=80 // pred_check_branch
          %1367 = sbr.rel (%p1365) target = $region97
        $region96: #{edge_graph_sage_forward.2} parent=80 // pred_region
          %s1368 = smul.u32 16, %s21
        $region97: #{edge_graph_sage_forward.2} parent=80 // pred_fallthru
          _
      $region81: #{edge_graph_sage_forward.2} parent=5 // pred_fallthru
        _
      %p1369 = scmp.le.s32.totalorder 2, %s12
      // Predicated region
      $region98: #{edge_graph_sage_forward.2} parent=5 // pred_check
        %p1370 = pneg %p1369
      $region99: #{edge_graph_sage_forward.2} parent=5 // pred_check_branch
        %1372 = sbr.rel (%p1370) target = $region101
      $region100: #{edge_graph_sage_forward.2} parent=5 // pred_region
        %s1373 = ssub.s32 %s12, 2
        // Predicated region
        $region102: #{edge_graph_sage_forward.2} parent=100 // pred_check
          %p1374 = pneg %p201
        $region103: #{edge_graph_sage_forward.2} parent=100 // pred_check_branch
          %1376 = sbr.rel (%p1374) target = $region105
        $region104: #{edge_graph_sage_forward.2} parent=100 // pred_region
          %s1377 = smul.u32 16, %s23
          %p1378 = scmp.lt.s32.totalorder %s1377, 47
          %s1379 = scalar_select %p1378, %s1377, 47
          %s1380 = smul.addr %s1379, 4
          %s1381 = scalar_lea.vmem %s6, %s1380
        $region105: #{edge_graph_sage_forward.2} parent=100 // pred_fallthru
          _
      $region101: #{edge_graph_sage_forward.2} parent=5 // pred_fallthru
        _
    $region6: #{edge_graph_sage_forward.2} parent=1 // loop_footer
      %s16 = sadd.s32 1, %s12
    $region7: #{edge_graph_sage_forward.2} parent=1 // loop_footer_branch
      %11 = sbr.rel target = $region3
    $region8: #{edge_graph_sage_forward.2} parent=1 // loop_exit
      _

</llo_original>
